<compile_context>
chip_gen: v7x
topology: tpu7x:2x2x1
jax: 0.10.0
libtpu: 0.0.40
codegen_flags: <defaults>
</compile_context>

<pallas_src>
import jax
import jax.numpy as jnp
from jax import lax
from jax.experimental import pallas as pl
from jax.experimental.pallas import tpu as pltpu

NUM_HEADS = 4  # attention heads (glue-side MHA)


# --------------------------------------------------------------------------------------
# Per-generation tuning
# --------------------------------------------------------------------------------------
def _device_tuning():
    """Compute dtype for the span-head kernel (bf16 EUP/VPU exists on v6e/v7x only)."""
    kind = ""
    try:
        kind = jax.devices()[0].device_kind.lower()
    except Exception:
        pass
    # Match generously ("TPU v6e", "TPU v7x", "TPU7x", ...); unknown chips fall back to f32,
    # which is always numerically safe (only slower on bf16-capable parts).
    if any(tok in kind for tok in ("v6", "v7", "7x")):
        return jnp.bfloat16
    return jnp.float32


# --------------------------------------------------------------------------------------
# Pallas kernels
# --------------------------------------------------------------------------------------
def span_head_kernel(qt_ref, et_ref, m_ref, w1t_ref, b12c_ref, w2t_ref, w3r_ref,
                     out_ref, a_ref):
    """One (span-head, batch, S-tile) grid step, all in transposed (H x ...) layout.

    qt_ref  : (1, H, T_pad)      decoder query states, transposed   (compute dtype)
    et_ref  : (1, H, S_tile)     encoder hidden states, transposed  (compute dtype)
    m_ref   : (1, 1, S_tile)     attention mask tile (1 = keep)     (f32)
    w1t_ref : (1, H, H)          metric_1 weight, transposed        (compute dtype)
    b12c_ref: (1, H, 1)          (b1 + b2) as a column              (f32)
    w2t_ref : (1, H, H)          metric_2 weight, transposed        (compute dtype)
    w3r_ref : (1, 1, H)          metric_3 weight, lane-dense row    (compute dtype)
    out_ref : (1, 1, T_pad, S_tile)  masked span logits             (f32)
    a_ref   : (H, T_pad) VMEM scratch a^T = (q W1 + b1 + b2)^T      (compute dtype)
    """
    s_idx = pl.program_id(2)
    cdt = a_ref.dtype

    # Cache a^T once per (head, batch); S axis is innermost so s == 0 marks a new pair.
    # f32 MXU accumulate, then cast once into the compute dtype (b2 already folded in).
    @pl.when(s_idx == 0)
    def _():
        a_ref[...] = (jnp.dot(w1t_ref[0], qt_ref[0],
                              preferred_element_type=jnp.float32)
                      + b12c_ref[0]).astype(cdt)

    # --- loop-invariant work, hoisted out of the per-query loop ---
    c_c = jnp.dot(w2t_ref[0], et_ref[0],
                  preferred_element_type=jnp.float32).astype(cdt)   # (H, S_tile), one cast
    w3 = w3r_ref[0]                 # (1, H)  compute dtype
    keep = m_ref[0] > 0.0           # (1, S_tile) bool, one compare
    neg = jnp.float32(-10000.0)

    T_pad = out_ref.shape[2]
    n_groups = T_pad // 8

    def group_block(a_cols):
        # a_cols: (H, 8).  Per query row the live intermediate is one (H, S_tile) block
        # (never (T,S,H)): tanh on the EUP, w3 contraction on the MXU, f32 accumulation.
        rows = []
        for tt in range(8):
            th = jnp.tanh(a_cols[:, tt:tt + 1] + c_c)                       # (H, S_tile)
            rows.append(jnp.dot(w3, th, preferred_element_type=jnp.float32))  # (1, S_tile)
        blk = jnp.concatenate(rows, axis=0)                                  # (8, S_tile) f32
        return jnp.where(keep, blk, neg)                                     # masked_fill

    if n_groups <= 8:   # typical SPN4RE: num_generated_triples small -> fully unrolled
        for g in range(n_groups):
            base = g * 8
            out_ref[0, 0, pl.ds(base, 8), :] = group_block(a_ref[:, pl.ds(base, 8)])
    else:               # large T: bound vreg live ranges with a partially unrolled loop
        def body(g, carry):
            base = pl.multiple_of(g * 8, 8)
            out_ref[0, 0, pl.ds(base, 8), :] = group_block(a_ref[:, pl.ds(base, 8)])
            return carry
        lax.fori_loop(0, n_groups, body, 0, unroll=4)


def class_head_kernel(q_ref, wc_ref, bc_ref, out_ref):
    """Single-step class-logit head over flattened (B*T, H), lane-padded output."""
    out_ref[...] = (jnp.dot(q_ref[...], wc_ref[...],
                            preferred_element_type=jnp.float32) + bc_ref[...])


# --------------------------------------------------------------------------------------
# Wrappers
# --------------------------------------------------------------------------------------
def span_heads_pallas(q_final, enc_h, attention_mask, W1, B1, W2, B2, W3,
                      *, s_tile=None, compute_dtype=None, vmem_limit_bytes=None):
    """Returns (8, B, T, S) masked span logits.  Grid = (head, batch, S-tile)."""
    NHD, H, _ = W1.shape
    B, T, _ = q_final.shape
    S = enc_h.shape[1]

    cdt = compute_dtype if compute_dtype is not None else _device_tuning()

    # Lane-dense output: S padded to a multiple of 128.  Single S step for typical BERT
    # lengths (S_pad <= 1024) on every generation; otherwise 512-wide tiles (the working
    # set at H=768, bf16 is ~10-16 MiB, which fits v7x's 64 MiB/TC with room to spare).
    s_pad128 = ((S + 127) // 128) * 128
    if s_tile is None:
        s_tile = s_pad128 if s_pad128 <= 1024 else 512
    s_tile = max(128, (min(s_tile, s_pad128) // 128) * 128)
    S_pad = ((s_pad128 + s_tile - 1) // s_tile) * s_tile
    n_s = S_pad // s_tile

    # T padded to a multiple of 8 so output rows are stored as full (8, S_tile) sublane
    # groups (unmasked vst), not per-row masked partial stores.
    T_pad = ((T + 7) // 8) * 8

    # Transposed / padded operands (cheap one-time XLA ops in the wrapper).
    q_t = jnp.pad(jnp.swapaxes(q_final, 1, 2),
                  ((0, 0), (0, 0), (0, T_pad - T))).astype(cdt)          # (B, H, T_pad)
    e_t = jnp.pad(jnp.swapaxes(enc_h, 1, 2),
                  ((0, 0), (0, 0), (0, S_pad - S))).astype(cdt)          # (B, H, S_pad)
    mask = jnp.pad(attention_mask.astype(jnp.float32).reshape(B, 1, S),
                   ((0, 0), (0, 0), (0, S_pad - S)))                     # pad region -> masked
    w1_t = jnp.swapaxes(W1, 1, 2).astype(cdt)                            # (8, H, H)
    w2_t = jnp.swapaxes(W2, 1, 2).astype(cdt)                            # (8, H, H)
    b12_c = jnp.swapaxes(B1 + B2, 1, 2).astype(jnp.float32)              # (8, H, 1)  b1+b2
    w3_r = W3.astype(cdt)                                                # (8, 1, H) lane-dense

    # Derive the scoped-VMEM request from the actual block shapes (double-buffered inputs
    # + output + scratch + temporaries headroom) instead of a blanket 48 MiB, so the
    # surrounding XLA fusions keep their scoped VMEM (matters on v7x's 64 MiB/TC).
    if vmem_limit_bytes is None:
        cb = jnp.dtype(cdt).itemsize
        est = (2 * H * T_pad * cb            # q^T
               + 2 * H * s_tile * cb         # e^T tile
               + 2 * s_tile * 4              # mask tile
               + 4 * H * H * cb              # W1^T + W2^T (double-buffered)
               + 2 * H * 4                   # (b1+b2) column
               + 2 * H * cb                  # w3 row
               + 2 * T_pad * s_tile * 4      # output tile
               + H * T_pad * cb              # a^T scratch
               + 6 * H * s_tile * 4)         # c_c / tanh / row temporaries headroom
        vmem_limit_bytes = min(max(int(est * 1.5) + (4 << 20), 16 << 20), 64 << 20)

    out = pl.pallas_call(
        span_head_kernel,
        out_shape=jax.ShapeDtypeStruct((NHD, B, T_pad, S_pad), jnp.float32),
        # Head axis outermost (see file header): W1/W2 stay VMEM-resident across batch/S.
        grid=(NHD, B, n_s),
        in_specs=[
            pl.BlockSpec((1, H, T_pad), lambda h, b, s: (b, 0, 0)),      # q^T
            pl.BlockSpec((1, H, s_tile), lambda h, b, s: (b, 0, s)),     # e^T tile
            pl.BlockSpec((1, 1, s_tile), lambda h, b, s: (b, 0, s)),     # mask tile
            pl.BlockSpec((1, H, H), lambda h, b, s: (h, 0, 0)),          # W1^T
            pl.BlockSpec((1, H, 1), lambda h, b, s: (h, 0, 0)),          # (b1+b2) column
            pl.BlockSpec((1, H, H), lambda h, b, s: (h, 0, 0)),          # W2^T
            pl.BlockSpec((1, 1, H), lambda h, b, s: (h, 0, 0)),          # w3 row
        ],
        out_specs=pl.BlockSpec((1, 1, T_pad, s_tile), lambda h, b, s: (h, b, 0, s)),
        scratch_shapes=[pltpu.VMEM((H, T_pad), cdt)],                    # cached a^T (cdt)
        compiler_params=pltpu.CompilerParams(
            # head/batch parallel (megacore sharding on v7x: 8 heads split 4+4 per TC,
            # each TC keeps its own W1/W2 copies), S innermost "arbitrary" for the a^T cache.
            dimension_semantics=("parallel", "parallel", "arbitrary"),
            vmem_limit_bytes=vmem_limit_bytes),
    )(q_t, e_t, mask, w1_t, b12_c, w2_t, w3_r)

    return out[:, :, :T, :S]


def class_head_pallas(q_final, wc, bc):
    """Class-logit linear head: one Pallas call over flattened (B*T, H), output padded to
    128 lanes so stores are full-vreg (unmasked) rather than lane-sparse vst.msk."""
    B, T, H = q_final.shape
    C1 = wc.shape[1]
    C_pad = ((C1 + 127) // 128) * 128
    wc_p = jnp.pad(wc.astype(jnp.float32), ((0, 0), (0, C_pad - C1)))
    bc_p = jnp.pad(bc.astype(jnp.float32).reshape(1, C1), ((0, 0), (0, C_pad - C1)))
    out = pl.pallas_call(
        class_head_kernel,
        out_shape=jax.ShapeDtypeStruct((B * T, C_pad), jnp.float32),
    )(q_final.reshape(B * T, H).astype(jnp.float32), wc_p, bc_p)
    return out.reshape(B, T, C_pad)[:, :, :C1]


# --------------------------------------------------------------------------------------
# Plain-JAX glue: small encoder / decoder transformer layers
# --------------------------------------------------------------------------------------
def layer_norm(x, p, eps=1e-12):
    mu = jnp.mean(x, -1, keepdims=True)
    var = jnp.mean((x - mu) ** 2, -1, keepdims=True)
    return (x - mu) / jnp.sqrt(var + eps) * p["g"] + p["b"]


def mha(q_in, kv_in, p, mask=None):
    B, Tq, H = q_in.shape
    Tk = kv_in.shape[1]
    d = H // NUM_HEADS
    q = (q_in @ p["wq"] + p["bq"]).reshape(B, Tq, NUM_HEADS, d).transpose(0, 2, 1, 3)
    k = (kv_in @ p["wk"] + p["bk"]).reshape(B, Tk, NUM_HEADS, d).transpose(0, 2, 1, 3)
    v = (kv_in @ p["wv"] + p["bv"]).reshape(B, Tk, NUM_HEADS, d).transpose(0, 2, 1, 3)
    scores = jnp.einsum("bhqd,bhkd->bhqk", q, k) / jnp.sqrt(jnp.float32(d))
    if mask is not None:
        scores = scores + (1.0 - mask.astype(jnp.float32))[:, None, None, :] * -10000.0
    attn = jax.nn.softmax(scores, axis=-1)
    ctx = jnp.einsum("bhqk,bhkd->bhqd", attn, v).transpose(0, 2, 1, 3).reshape(B, Tq, H)
    return ctx @ p["wo"] + p["bo"]


def ffn(x, p):
    return jax.nn.gelu(x @ p["wi"] + p["bi"]) @ p["wo"] + p["bo"]


def seq_encoder(p, input_ids, attention_mask):
    B, S = input_ids.shape
    h = p["word_emb"][input_ids] + p["pos_emb"][None, :S, :]
    h = layer_norm(h, p["ln_emb"])
    h = layer_norm(h + mha(h, h, p["attn"], attention_mask), p["ln_attn"])
    h = layer_norm(h + ffn(h, p["ffn"]), p["ln_ffn"])
    pooled = jnp.tanh(h[:, 0] @ p["pool_w"] + p["pool_b"])
    return h, pooled


def set_decoder(p, enc_h, attention_mask):
    B = enc_h.shape[0]
    T, H = p["query_embed"].shape
    hs = layer_norm(jnp.broadcast_to(p["query_embed"][None], (B, T, H)), p["ln_q"])
    for lp in p["layers"]:
        hs = layer_norm(hs + mha(hs, hs, lp["self_attn"], None), lp["ln_sa"])
        hs = layer_norm(hs + mha(hs, enc_h, lp["cross_attn"], attention_mask), lp["ln_ca"])
        hs = layer_norm(hs + ffn(hs, lp["ffn"]), lp["ln_ffn"])
    class_logits = class_head_pallas(hs, p["heads"]["wc"], p["heads"]["bc"])
    span = span_heads_pallas(hs, enc_h, attention_mask,
                             p["W1"], p["B1"], p["W2"], p["B2"], p["W3"])
    return class_logits, span


SPAN_NAMES = ("sub_start_logits", "sub_end_logits",
              "obj_start_logits", "obj_end_logits",
              "aspect_start_logits", "aspect_end_logits",
              "opinion_start_logits", "opinion_end_logits")


def setpred4re_forward(params, input_ids, attention_mask):
    last_hidden_state, _pooler_output = seq_encoder(params["encoder"], input_ids, attention_mask)
    class_logits, span = set_decoder(params["decoder"], last_hidden_state, attention_mask)
    outputs = {"pred_rel_logits": class_logits}
    for i, name in enumerate(SPAN_NAMES):
        outputs[name] = span[i]
    # TODO(synk): SetCriterion (Hungarian matcher) loss not implemented; targets=None path only.
    return outputs


# --------------------------------------------------------------------------------------
# Deterministic parameter initialization
# --------------------------------------------------------------------------------------
def init_params(key, *, V, S, H, T, C, I, L_dec):
    keys = iter(jax.random.split(key, 256))

    def nrm(shape):
        return jax.random.normal(next(keys), shape, jnp.float32) * 0.02

    def ln():
        return {"g": jnp.ones((H,), jnp.float32), "b": jnp.zeros((H,), jnp.float32)}

    def attn():
        return {"wq": nrm((H, H)), "bq": nrm((H,)), "wk": nrm((H, H)), "bk": nrm((H,)),
                "wv": nrm((H, H)), "bv": nrm((H,)), "wo": nrm((H, H)), "bo": nrm((H,))}

    def ffn_p():
        return {"wi": nrm((H, I)), "bi": nrm((I,)), "wo": nrm((I, H)), "bo": nrm((H,))}

    enc = {"word_emb": nrm((V, H)), "pos_emb": nrm((S, H)), "ln_emb": ln(),
           "attn": attn(), "ln_attn": ln(), "ffn": ffn_p(), "ln_ffn": ln(),
           "pool_w": nrm((H, H)), "pool_b": nrm((H,))}

    layers = [{"self_attn": attn(), "ln_sa": ln(),
               "cross_attn": attn(), "ln_ca": ln(),
               "ffn": ffn_p(), "ln_ffn": ln()} for _ in range(L_dec)]

    dec = {"query_embed": nrm((T, H)), "ln_q": ln(), "layers": layers,
           "heads": {"wc": nrm((H, C + 1)), "bc": nrm((C + 1,))},
           # 8 span heads (sub/obj/aspect/opinion x start/end), stacked on axis 0.
           # W3 is stored pre-transposed (8, 1, H): lane-dense along H for the kernel.
           "W1": jnp.stack([nrm((H, H)) for _ in range(8)]),
           "B1": jnp.stack([nrm((1, H)) for _ in range(8)]),
           "W2": jnp.stack([nrm((H, H)) for _ in range(8)]),
           "B2": jnp.stack([nrm((1, H)) for _ in range(8)]),
           "W3": jnp.stack([nrm((1, H)) for _ in range(8)])}

    return {"encoder": enc, "decoder": dec}


# --------------------------------------------------------------------------------------
if __name__ == "__main__":
    B, S, H, V = 2, 16, 32, 50       # batch, seq len, hidden, vocab
    T, C, I, L_dec = 8, 4, 64, 1     # num_generated_triples, num_classes, FFN dim, dec layers

    root = jax.random.PRNGKey(0)
    k_params, k_ids = jax.random.split(root)

    params = init_params(k_params, V=V, S=S, H=H, T=T, C=C, I=I, L_dec=L_dec)

    input_ids = jax.random.randint(k_ids, (B, S), 0, V, dtype=jnp.int32)
    valid_lens = jnp.array([[S], [10]], dtype=jnp.int32)
    attention_mask = (jnp.arange(S)[None, :] < valid_lens).astype(jnp.float32)

    fwd = jax.jit(setpred4re_forward)
    outputs = fwd(params, input_ids, attention_mask)
    jax.block_until_ready(outputs)

    assert outputs["pred_rel_logits"].shape == (B, T, C + 1)
    for name in SPAN_NAMES:
        assert outputs[name].shape == (B, T, S)
    # masked_fill semantics: padded positions of batch 1 (valid len 10) are exactly -10000.
    assert bool(jnp.all(outputs["sub_start_logits"][1, :, 10:] == -10000.0))
    assert bool(jnp.all(jnp.isfinite(outputs["pred_rel_logits"])))

    print("KERNEL_OK")
</pallas_src>

<mosaic_0001>
module attributes {stable_mosaic.version = 11 : i64} {
  func.func @class_head_kernel(%arg0: memref<16x32xf32, #tpu.memory_space<vmem>>, %arg1: memref<32x128xf32, #tpu.memory_space<vmem>>, %arg2: memref<1x128xf32, #tpu.memory_space<vmem>>, %arg3: memref<16x128xf32, #tpu.memory_space<vmem>>) attributes {dimension_semantics = [], scalar_prefetch = 0 : i64, scratch_operands = 0 : i64, tpu.core_type = #tpu.core_type<tc>} {
    %c0 = arith.constant 0 : index
    %c0_0 = arith.constant 0 : index
    %0 = vector.load %arg0[%c0, %c0_0] : memref<16x32xf32, #tpu.memory_space<vmem>>, vector<16x32xf32>
    %c0_1 = arith.constant 0 : index
    %c0_2 = arith.constant 0 : index
    %1 = vector.load %arg1[%c0_1, %c0_2] : memref<32x128xf32, #tpu.memory_space<vmem>>, vector<32x128xf32>
    %cst = arith.constant dense<0.000000e+00> : vector<16x128xf32>
    %2 = tpu.matmul %0, %1, %cst {dimension_numbers = #tpu.dot_dimension_numbers<[1], [0], [0], [1], [0, 0, 1, 1], [], []>} : vector<16x32xf32>, vector<32x128xf32>, vector<16x128xf32> -> vector<16x128xf32>
    %c0_3 = arith.constant 0 : index
    %c0_4 = arith.constant 0 : index
    %3 = vector.load %arg2[%c0_3, %c0_4] : memref<1x128xf32, #tpu.memory_space<vmem>>, vector<1x128xf32>
    %4 = vector.broadcast %3 : vector<1x128xf32> to vector<16x128xf32>
    %5 = arith.addf %2, %4 : vector<16x128xf32>
    %c0_5 = arith.constant 0 : index
    %c0_6 = arith.constant 0 : index
    %6 = vector.load %arg3[%c0_5, %c0_6] : memref<16x128xf32, #tpu.memory_space<vmem>>, vector<16x128xf32>
    tpu.vector_store %arg3[%c0_5, %c0_6], %5 {strides = array<i32>} : memref<16x128xf32, #tpu.memory_space<vmem>>, vector<16x128xf32>,
    return
  }
}

module attributes {stable_mosaic.version = 11 : i64} {
  func.func @span_head_kernel(%arg0: i32, %arg1: i32, %arg2: i32, %arg3: memref<1x32x8xf32, #tpu.memory_space<vmem>>, %arg4: memref<1x32x128xf32, #tpu.memory_space<vmem>>, %arg5: memref<1x1x128xf32, #tpu.memory_space<vmem>>, %arg6: memref<1x32x32xf32, #tpu.memory_space<vmem>>, %arg7: memref<1x32x1xf32, #tpu.memory_space<vmem>>, %arg8: memref<1x32x32xf32, #tpu.memory_space<vmem>>, %arg9: memref<1x1x32xf32, #tpu.memory_space<vmem>>, %arg10: memref<1x1x8x128xf32, #tpu.memory_space<vmem>>, %arg11: memref<32x8xf32, #tpu.memory_space<vmem>>) attributes {dimension_semantics = [#tpu.dimension_semantics<parallel>, #tpu.dimension_semantics<parallel>, #tpu.dimension_semantics<arbitrary>], iteration_bounds = array<i64: 8, 2, 1>, scalar_prefetch = 0 : i64, scratch_operands = 1 : i64, tpu.core_type = #tpu.core_type<tc>, window_params = [{transform_indices = @transform_0, window_bounds = array<i64: 1, 32, 8>}, {transform_indices = @transform_1, window_bounds = array<i64: 1, 32, 128>}, {transform_indices = @transform_2, window_bounds = array<i64: 1, 1, 128>}, {transform_indices = @transform_3, window_bounds = array<i64: 1, 32, 32>}, {transform_indices = @transform_4, window_bounds = array<i64: 1, 32, 1>}, {transform_indices = @transform_5, window_bounds = array<i64: 1, 32, 32>}, {transform_indices = @transform_6, window_bounds = array<i64: 1, 1, 32>}, {transform_indices = @transform_7, window_bounds = array<i64: 1, 1, 8, 128>}]} {
    %c0_i32 = arith.constant 0 : i32
    %0 = arith.cmpi eq, %arg2, %c0_i32 : i32
    %1 = arith.extui %0 : i1 to i32
    %c0_i32_0 = arith.constant 0 : i32
    %2 = arith.cmpi ne, %1, %c0_i32_0 : i32
    scf.if %2 {
      %c0_28 = arith.constant 0 : index
      %c0_29 = arith.constant 0 : index
      %c0_30 = arith.constant 0 : index
      %63 = vector.load %arg6[%c0_28, %c0_29, %c0_30] : memref<1x32x32xf32, #tpu.memory_space<vmem>>, vector<1x32x32xf32>
      %64 = vector.shape_cast %63 : vector<1x32x32xf32> to vector<32x32xf32>
      %c0_31 = arith.constant 0 : index
      %c0_32 = arith.constant 0 : index
      %c0_33 = arith.constant 0 : index
      %65 = vector.load %arg3[%c0_31, %c0_32, %c0_33] : memref<1x32x8xf32, #tpu.memory_space<vmem>>, vector<1x32x8xf32>
      %66 = vector.shape_cast %65 : vector<1x32x8xf32> to vector<32x8xf32>
      %cst_34 = arith.constant dense<0.000000e+00> : vector<32x8xf32>
      %67 = tpu.matmul %64, %66, %cst_34 {dimension_numbers = #tpu.dot_dimension_numbers<[1], [0], [0], [1], [0, 0, 1, 1], [], []>} : vector<32x32xf32>, vector<32x8xf32>, vector<32x8xf32> -> vector<32x8xf32>
      %c0_35 = arith.constant 0 : index
      %c0_36 = arith.constant 0 : index
      %c0_37 = arith.constant 0 : index
      %68 = vector.load %arg7[%c0_35, %c0_36, %c0_37] : memref<1x32x1xf32, #tpu.memory_space<vmem>>, vector<1x32x1xf32>
      %69 = vector.shape_cast %68 : vector<1x32x1xf32> to vector<32x1xf32>
      %70 = vector.broadcast %69 : vector<32x1xf32> to vector<32x8xf32>
      %71 = arith.addf %67, %70 : vector<32x8xf32>
      %c0_38 = arith.constant 0 : index
      %c0_39 = arith.constant 0 : index
      %72 = vector.load %arg11[%c0_38, %c0_39] : memref<32x8xf32, #tpu.memory_space<vmem>>, vector<32x8xf32>
      tpu.vector_store %arg11[%c0_38, %c0_39], %71 {strides = array<i32>} : memref<32x8xf32, #tpu.memory_space<vmem>>, vector<32x8xf32>,
    } else {
    }
    %c0 = arith.constant 0 : index
    %c0_1 = arith.constant 0 : index
    %c0_2 = arith.constant 0 : index
    %3 = vector.load %arg8[%c0, %c0_1, %c0_2] : memref<1x32x32xf32, #tpu.memory_space<vmem>>, vector<1x32x32xf32>
    %4 = vector.shape_cast %3 : vector<1x32x32xf32> to vector<32x32xf32>
    %c0_3 = arith.constant 0 : index
    %c0_4 = arith.constant 0 : index
    %c0_5 = arith.constant 0 : index
    %5 = vector.load %arg4[%c0_3, %c0_4, %c0_5] : memref<1x32x128xf32, #tpu.memory_space<vmem>>, vector<1x32x128xf32>
    %6 = vector.shape_cast %5 : vector<1x32x128xf32> to vector<32x128xf32>
    %cst = arith.constant dense<0.000000e+00> : vector<32x128xf32>
    %7 = tpu.matmul %4, %6, %cst {dimension_numbers = #tpu.dot_dimension_numbers<[1], [0], [0], [1], [0, 0, 1, 1], [], []>} : vector<32x32xf32>, vector<32x128xf32>, vector<32x128xf32> -> vector<32x128xf32>
    %c0_6 = arith.constant 0 : index
    %c0_7 = arith.constant 0 : index
    %c0_8 = arith.constant 0 : index
    %8 = vector.load %arg9[%c0_6, %c0_7, %c0_8] : memref<1x1x32xf32, #tpu.memory_space<vmem>>, vector<1x1x32xf32>
    %9 = vector.shape_cast %8 : vector<1x1x32xf32> to vector<1x32xf32>
    %c0_9 = arith.constant 0 : index
    %c0_10 = arith.constant 0 : index
    %c0_11 = arith.constant 0 : index
    %10 = vector.load %arg5[%c0_9, %c0_10, %c0_11] : memref<1x1x128xf32, #tpu.memory_space<vmem>>, vector<1x1x128xf32>
    %11 = vector.shape_cast %10 : vector<1x1x128xf32> to vector<1x128xf32>
    %cst_12 = arith.constant 0.000000e+00 : f32
    %12 = vector.broadcast %cst_12 : f32 to vector<1x128xf32>
    %13 = arith.cmpf ogt, %11, %12 : vector<1x128xf32>
    %c0_13 = arith.constant 0 : index
    %c0_14 = arith.constant 0 : index
    %14 = vector.load %arg11[%c0_13, %c0_14] : memref<32x8xf32, #tpu.memory_space<vmem>>, vector<32x8xf32>
    %15 = vector.extract_strided_slice %14 {offsets = [0, 0], sizes = [32, 1], strides = [1, 1]} : vector<32x8xf32> to vector<32x1xf32>
    %16 = vector.broadcast %15 : vector<32x1xf32> to vector<32x128xf32>
    %17 = arith.addf %16, %7 : vector<32x128xf32>
    %18 = math.tanh %17 : vector<32x128xf32>
    %cst_15 = arith.constant dense<0.000000e+00> : vector<1x128xf32>
    %19 = tpu.matmul %9, %18, %cst_15 {dimension_numbers = #tpu.dot_dimension_numbers<[1], [0], [0], [1], [0, 0, 1, 1], [], []>} : vector<1x32xf32>, vector<32x128xf32>, vector<1x128xf32> -> vector<1x128xf32>
    %20 = vector.extract_strided_slice %14 {offsets = [0, 1], sizes = [32, 1], strides = [1, 1]} : vector<32x8xf32> to vector<32x1xf32>
    %21 = vector.broadcast %20 : vector<32x1xf32> to vector<32x128xf32>
    %22 = arith.addf %21, %7 : vector<32x128xf32>
    %23 = math.tanh %22 : vector<32x128xf32>
    %cst_16 = arith.constant dense<0.000000e+00> : vector<1x128xf32>
    %24 = tpu.matmul %9, %23, %cst_16 {dimension_numbers = #tpu.dot_dimension_numbers<[1], [0], [0], [1], [0, 0, 1, 1], [], []>} : vector<1x32xf32>, vector<32x128xf32>, vector<1x128xf32> -> vector<1x128xf32>
    %25 = vector.extract_strided_slice %14 {offsets = [0, 2], sizes = [32, 1], strides = [1, 1]} : vector<32x8xf32> to vector<32x1xf32>
    %26 = vector.broadcast %25 : vector<32x1xf32> to vector<32x128xf32>
    %27 = arith.addf %26, %7 : vector<32x128xf32>
    %28 = math.tanh %27 : vector<32x128xf32>
    %cst_17 = arith.constant dense<0.000000e+00> : vector<1x128xf32>
    %29 = tpu.matmul %9, %28, %cst_17 {dimension_numbers = #tpu.dot_dimension_numbers<[1], [0], [0], [1], [0, 0, 1, 1], [], []>} : vector<1x32xf32>, vector<32x128xf32>, vector<1x128xf32> -> vector<1x128xf32>
    %30 = vector.extract_strided_slice %14 {offsets = [0, 3], sizes = [32, 1], strides = [1, 1]} : vector<32x8xf32> to vector<32x1xf32>
    %31 = vector.broadcast %30 : vector<32x1xf32> to vector<32x128xf32>
    %32 = arith.addf %31, %7 : vector<32x128xf32>
    %33 = math.tanh %32 : vector<32x128xf32>
    %cst_18 = arith.constant dense<0.000000e+00> : vector<1x128xf32>
    %34 = tpu.matmul %9, %33, %cst_18 {dimension_numbers = #tpu.dot_dimension_numbers<[1], [0], [0], [1], [0, 0, 1, 1], [], []>} : vector<1x32xf32>, vector<32x128xf32>, vector<1x128xf32> -> vector<1x128xf32>
    %35 = vector.extract_strided_slice %14 {offsets = [0, 4], sizes = [32, 1], strides = [1, 1]} : vector<32x8xf32> to vector<32x1xf32>
    %36 = vector.broadcast %35 : vector<32x1xf32> to vector<32x128xf32>
    %37 = arith.addf %36, %7 : vector<32x128xf32>
    %38 = math.tanh %37 : vector<32x128xf32>
    %cst_19 = arith.constant dense<0.000000e+00> : vector<1x128xf32>
    %39 = tpu.matmul %9, %38, %cst_19 {dimension_numbers = #tpu.dot_dimension_numbers<[1], [0], [0], [1], [0, 0, 1, 1], [], []>} : vector<1x32xf32>, vector<32x128xf32>, vector<1x128xf32> -> vector<1x128xf32>
    %40 = vector.extract_strided_slice %14 {offsets = [0, 5], sizes = [32, 1], strides = [1, 1]} : vector<32x8xf32> to vector<32x1xf32>
    %41 = vector.broadcast %40 : vector<32x1xf32> to vector<32x128xf32>
    %42 = arith.addf %41, %7 : vector<32x128xf32>
    %43 = math.tanh %42 : vector<32x128xf32>
    %cst_20 = arith.constant dense<0.000000e+00> : vector<1x128xf32>
    %44 = tpu.matmul %9, %43, %cst_20 {dimension_numbers = #tpu.dot_dimension_numbers<[1], [0], [0], [1], [0, 0, 1, 1], [], []>} : vector<1x32xf32>, vector<32x128xf32>, vector<1x128xf32> -> vector<1x128xf32>
    %45 = vector.extract_strided_slice %14 {offsets = [0, 6], sizes = [32, 1], strides = [1, 1]} : vector<32x8xf32> to vector<32x1xf32>
    %46 = vector.broadcast %45 : vector<32x1xf32> to vector<32x128xf32>
    %47 = arith.addf %46, %7 : vector<32x128xf32>
    %48 = math.tanh %47 : vector<32x128xf32>
    %cst_21 = arith.constant dense<0.000000e+00> : vector<1x128xf32>
    %49 = tpu.matmul %9, %48, %cst_21 {dimension_numbers = #tpu.dot_dimension_numbers<[1], [0], [0], [1], [0, 0, 1, 1], [], []>} : vector<1x32xf32>, vector<32x128xf32>, vector<1x128xf32> -> vector<1x128xf32>
    %50 = vector.extract_strided_slice %14 {offsets = [0, 7], sizes = [32, 1], strides = [1, 1]} : vector<32x8xf32> to vector<32x1xf32>
    %51 = vector.broadcast %50 : vector<32x1xf32> to vector<32x128xf32>
    %52 = arith.addf %51, %7 : vector<32x128xf32>
    %53 = math.tanh %52 : vector<32x128xf32>
    %cst_22 = arith.constant dense<0.000000e+00> : vector<1x128xf32>
    %54 = tpu.matmul %9, %53, %cst_22 {dimension_numbers = #tpu.dot_dimension_numbers<[1], [0], [0], [1], [0, 0, 1, 1], [], []>} : vector<1x32xf32>, vector<32x128xf32>, vector<1x128xf32> -> vector<1x128xf32>
    %55 = tpu.concatenate %19, %24, %29, %34, %39, %44, %49, %54 in 0 : vector<1x128xf32>, vector<1x128xf32>, vector<1x128xf32>, vector<1x128xf32>, vector<1x128xf32>, vector<1x128xf32>, vector<1x128xf32>, vector<1x128xf32> -> vector<8x128xf32>
    %cst_23 = arith.constant -1.000000e+04 : f32
    %56 = vector.shape_cast %13 : vector<1x128xi1> to vector<1x128xi1>
    %57 = vector.broadcast %56 : vector<1x128xi1> to vector<8x128xi1>
    %58 = vector.broadcast %cst_23 : f32 to vector<8x128xf32>
    %59 = arith.select %57, %55, %58 : vector<8x128xi1>, vector<8x128xf32>
    %c0_24 = arith.constant 0 : index
    %c0_25 = arith.constant 0 : index
    %c0_26 = arith.constant 0 : index
    %c0_27 = arith.constant 0 : index
    %60 = vector.load %arg10[%c0_24, %c0_25, %c0_26, %c0_27] : memref<1x1x8x128xf32, #tpu.memory_space<vmem>>, vector<1x1x8x128xf32>
    %61 = vector.shape_cast %60 : vector<1x1x8x128xf32> to vector<8x128xf32>
    %62 = vector.shape_cast %59 : vector<8x128xf32> to vector<1x1x8x128xf32>
    tpu.vector_store %arg10[%c0_24, %c0_25, %c0_26, %c0_27], %62 {strides = array<i32>} : memref<1x1x8x128xf32, #tpu.memory_space<vmem>>, vector<1x1x8x128xf32>,
    return
  }
  func.func @transform_0(%arg0: i32, %arg1: i32, %arg2: i32) -> (i32, i32, i32) {
    %c0_i32 = arith.constant 0 : i32
    %c0_i32_0 = arith.constant 0 : i32
    %c0_i32_1 = arith.constant 0 : i32
    return %arg1, %c0_i32, %c0_i32_0 : i32, i32, i32
  }
  func.func @transform_1(%arg0: i32, %arg1: i32, %arg2: i32) -> (i32, i32, i32) {
    %c0_i32 = arith.constant 0 : i32
    %c0_i32_0 = arith.constant 0 : i32
    return %arg1, %c0_i32, %arg2 : i32, i32, i32
  }
  func.func @transform_2(%arg0: i32, %arg1: i32, %arg2: i32) -> (i32, i32, i32) {
    %c0_i32 = arith.constant 0 : i32
    %c0_i32_0 = arith.constant 0 : i32
    return %arg1, %c0_i32, %arg2 : i32, i32, i32
  }
  func.func @transform_3(%arg0: i32, %arg1: i32, %arg2: i32) -> (i32, i32, i32) {
    %c0_i32 = arith.constant 0 : i32
    %c0_i32_0 = arith.constant 0 : i32
    %c0_i32_1 = arith.constant 0 : i32
    return %arg0, %c0_i32, %c0_i32_0 : i32, i32, i32
  }
  func.func @transform_4(%arg0: i32, %arg1: i32, %arg2: i32) -> (i32, i32, i32) {
    %c0_i32 = arith.constant 0 : i32
    %c0_i32_0 = arith.constant 0 : i32
    %c0_i32_1 = arith.constant 0 : i32
    return %arg0, %c0_i32, %c0_i32_0 : i32, i32, i32
  }
  func.func @transform_5(%arg0: i32, %arg1: i32, %arg2: i32) -> (i32, i32, i32) {
    %c0_i32 = arith.constant 0 : i32
    %c0_i32_0 = arith.constant 0 : i32
    %c0_i32_1 = arith.constant 0 : i32
    return %arg0, %c0_i32, %c0_i32_0 : i32, i32, i32
  }
  func.func @transform_6(%arg0: i32, %arg1: i32, %arg2: i32) -> (i32, i32, i32) {
    %c0_i32 = arith.constant 0 : i32
    %c0_i32_0 = arith.constant 0 : i32
    %c0_i32_1 = arith.constant 0 : i32
    return %arg0, %c0_i32, %c0_i32_0 : i32, i32, i32
  }
  func.func @transform_7(%arg0: i32, %arg1: i32, %arg2: i32) -> (i32, i32, i32, i32) {
    %c0_i32 = arith.constant 0 : i32
    %c0_i32_0 = arith.constant 0 : i32
    return %arg0, %arg1, %c0_i32, %arg2 : i32, i32, i32, i32
  }
}

</mosaic_0001>

<llo_original>
// kernel: setpred4re_forward.2
$region0: #{setpred4re_forward.2}
  #allocation0 [shape = 'u32[]', space=smem, size = 0x4, offset = 0x4, fixed_abs, tag = 'smem constant byte address 0x4 - core index']
  #allocation1 [shape = 'u32[144,128]{1,0:T(1,128)}', space=vmem, size = 0x12000, scoped, tag = 'internal scratch']
  %s0 = inlined_call_operand.vmem [shape: f32[16,32], index: 0, kind: input, shape index: {}]
  %s1 = inlined_call_operand.vmem [shape: f32[32,128], index: 1, kind: input, shape index: {}]
  %s2 = inlined_call_operand.vmem [shape: f32[1,128], index: 2, kind: input, shape index: {}]
  %s3 = inlined_call_operand.vmem [shape: f32[16,128], index: 3, kind: output, shape index: {}]
  %s4 = sld [smem:[#allocation0]]
  $region22: #{setpred4re_forward.2} parent=0
    _
  %s6 = ssub.s32 1, %s4
  %s7 = scalar_select 0, %s6, %s4
  // Predicated region
  $region2: #{setpred4re_forward.2} parent=0 // pred_check
    _
  $region3: #{setpred4re_forward.2} parent=0 // pred_check_branch
    %9 = sbr.rel (0) target = $region5
  $region4: #{setpred4re_forward.2} parent=0 // pred_region
    _
  $region5: #{setpred4re_forward.2} parent=0 // pred_fallthru
    _
  // Predicated region
  $region6: #{setpred4re_forward.2} parent=0 // pred_check
    _
  $region7: #{setpred4re_forward.2} parent=0 // pred_check_branch
    %11 = sbr.rel (0) target = $region9
  $region8: #{setpred4re_forward.2} parent=0 // pred_region
    _
  $region9: #{setpred4re_forward.2} parent=0 // pred_fallthru
    _
  // Predicated region
  $region10: #{setpred4re_forward.2} parent=0 // pred_check
    _
  $region11: #{setpred4re_forward.2} parent=0 // pred_check_branch
    %13 = sbr.rel (0) target = $region13
  $region12: #{setpred4re_forward.2} parent=0 // pred_region
    _
  $region13: #{setpred4re_forward.2} parent=0 // pred_fallthru
    _
  %v14 = vld [vmem:[%s0] sm:$0xff]
  %v15 = vld [vmem:[%s0 + $0x8] sm:$0xff]
  %v16 = vld [vmem:[%s1] sm:$0xff]
  %v17 = vld [vmem:[%s1 + $0x8] sm:$0xff]
  %v18 = vld [vmem:[%s1 + $0x10] sm:$0xff]
  %v19 = vld [vmem:[%s1 + $0x18] sm:$0xff]
  %v20 = vld [vmem:[%s2] sm:$0x1]
  %v22 = vlaneseq
  %v23 = vshrl.u32 %v22, 7
  %v24 = vsub.s32 0, %v23
  %v25 = vrot.slane %v20, %v24
  %vm27 = vcmask 261120
  %v29 = vsel %vm27, %v14, 0
  %v32 = vsel %vm27, %v15, 0
  %34 = vmatprep.subr.mxu0 0.0
  %35 = vmatpush1.msra.mxu0 %v16
  %36 = vmatprep.subr.mxu0 0.0
  %37 = vmatpush1.msra.mxu0 %v17
  %38 = vmatprep.subr.mxu0 0.0
  %39 = vmatpush1.msra.mxu0 %v18
  %40 = vmatprep.subr.mxu0 0.0
  %41 = vmatpush1.msra.mxu0 %v19
  %42 = vmatprep.subr.mxu0 0.0
  %43 = vmatpush1.msra.mxu0 0.0
  %44 = vmatprep.subr.mxu0 0.0
  %45 = vmatpush1.msra.mxu0 0.0
  %46 = vmatprep.subr.mxu0 0.0
  %47 = vmatpush1.msra.mxu0 0.0
  %48 = vmatprep.subr.mxu0 0.0
  %49 = vmatpush1.msra.mxu0 0.0
  %50 = vmatprep.subr.mxu0 0.0
  %51 = vmatpush1.msra.mxu0 0.0
  %52 = vmatprep.subr.mxu0 0.0
  %53 = vmatpush1.msra.mxu0 0.0
  %54 = vmatprep.subr.mxu0 0.0
  %55 = vmatpush1.msra.mxu0 0.0
  %56 = vmatprep.subr.mxu0 0.0
  %57 = vmatpush1.msra.mxu0 0.0
  %58 = vmatprep.subr.mxu0 0.0
  %59 = vmatpush1.msra.mxu0 0.0
  %60 = vmatprep.subr.mxu0 0.0
  %61 = vmatpush1.msra.mxu0 0.0
  %62 = vmatprep.subr.mxu0 0.0
  %63 = vmatpush1.msra.mxu0 0.0
  %64 = vmatprep.subr.mxu0 0.0
  %65 = vmatpush1.msra.mxu0 0.0
  %66 = vmatprep.subr.mxu0 0.0
  %67 = vmatpush1.msra.mxu0 0.0
  %68 = vmatprep.subr.mxu0 0.0
  %69 = vmatpush1.msra.mxu0 0.0
  %70 = vmatprep.subr.mxu0 0.0
  %71 = vmatpush1.msra.mxu0 0.0
  %72 = vmatprep.subr.mxu0 0.0
  %73 = vmatpush1.msra.mxu0 0.0
  %74 = vmatprep.subr.mxu0 0.0
  %75 = vmatpush1.msra.mxu0 0.0
  %76 = vmatprep.subr.mxu0 0.0
  %77 = vmatpush1.msra.mxu0 0.0
  %78 = vmatprep.subr.mxu0 0.0
  %79 = vmatpush1.msra.mxu0 0.0
  %80 = vmatprep.subr.mxu0 0.0
  %81 = vmatpush1.msra.mxu0 0.0
  %82 = vmatprep.subr.mxu0 0.0
  %83 = vmatpush1.msra.mxu0 0.0
  %84 = vmatprep.subr.mxu0 0.0
  %85 = vmatpush1.msra.mxu0 0.0
  %86 = vmatprep.subr.mxu0 0.0
  %87 = vmatpush1.msra.mxu0 0.0
  %88 = vmatprep.subr.mxu0 0.0
  %89 = vmatpush1.msra.mxu0 0.0
  %90 = vmatprep.subr.mxu0 0.0
  %91 = vmatpush1.msra.mxu0 0.0
  %92 = vmatprep.subr.mxu0 0.0
  %93 = vmatpush1.msra.mxu0 0.0
  %94 = vmatprep.subr.mxu0 0.0
  %95 = vmatpush1.msra.mxu0 0.0
  %96 = vmatprep.subr.mxu0 0.0
  %97 = vmatpush1.msra.mxu0 0.0
  %98 = vmatprep.mubr.f32.mxu0 0.0
  %99 = vmatmul.mubr.f32.gmra.mrb[0].mxu0 %v29
  %v100 = vpop.f32.mrb[0].mxu0
  %v101 = vadd.f32 %v25, %v100
  %v102 = vpop.f32.mrb[0].mxu0
  %103 = vmatprep.mubr.f32.mxu0 0.0
  %104 = vmatmul.mubr.f32.gmra.mrb[0].mxu0 %v32
  %v105 = vpop.f32.mrb[0].mxu0
  %v106 = vadd.f32 %v25, %v105
  %v107 = vpop.f32.mrb[0].mxu0
  %108 = vdwg.mxu0
  %109 = vst [vmem:[%s3] sm:$0xff] %v101
  %110 = vst [vmem:[%s3 + $0x8] sm:$0xff] %v106
  // Predicated region
  $region14: #{setpred4re_forward.2} parent=0 // pred_check
    _
  $region15: #{setpred4re_forward.2} parent=0 // pred_check_branch
    %112 = sbr.rel (0) target = $region17
  $region16: #{setpred4re_forward.2} parent=0 // pred_region
    _
  $region17: #{setpred4re_forward.2} parent=0 // pred_fallthru
    _
  // Predicated region
  $region18: #{setpred4re_forward.2} parent=0 // pred_check
    _
  $region19: #{setpred4re_forward.2} parent=0 // pred_check_branch
    %114 = sbr.rel (0) target = $region21
  $region20: #{setpred4re_forward.2} parent=0 // pred_region
    _
  $region21: #{setpred4re_forward.2} parent=0 // pred_fallthru
    _

// kernel: setpred4re_forward.3
$region0: #{setpred4re_forward.3}
  #allocation0 [shape = 'u32[]', space=smem, size = 0x4, offset = 0x4, fixed_abs, tag = 'smem constant byte address 0x4 - core index']
  #allocation1 [shape = 'u32[144,128]{1,0:T(1,128)}', space=vmem, size = 0x12000, scoped, tag = 'internal scratch']
  #allocation2 [shape = 'f32[32,8]{1,0:T(8,128)}', space=vmem, size = 0x4000, scoped, tag = 'scratch operand']
  %s0 = inlined_call_operand.vmem [shape: f32[2,32,8], index: 0, kind: input, shape index: {}]
  %s1 = inlined_call_operand.vmem [shape: f32[2,32,128], index: 1, kind: input, shape index: {}]
  %s2 = inlined_call_operand.vmem [shape: f32[2,1,128], index: 2, kind: input, shape index: {}]
  %s3 = inlined_call_operand.vmem [shape: f32[8,32,32], index: 3, kind: input, shape index: {}]
  %s4 = inlined_call_operand.vmem [shape: f32[8,32,1], index: 4, kind: input, shape index: {}]
  %s5 = inlined_call_operand.vmem [shape: f32[8,32,32], index: 5, kind: input, shape index: {}]
  %s6 = inlined_call_operand.vmem [shape: f32[8,1,32], index: 6, kind: input, shape index: {}]
  %s7 = inlined_call_operand.vmem [shape: f32[8,2,8,128], index: 7, kind: output, shape index: {}]
  %s8 = sld [smem:[#allocation0]]
  $region65: #{setpred4re_forward.3} parent=0
    _
  %s10 = ssub.s32 1, %s8
  %s11 = scalar_select 0, %s10, %s8
  loop: start=0, step=1, limit=18
  $region2: #{setpred4re_forward.3} parent=0 // loop_pre_header
    _
  $region3: #{setpred4re_forward.3} parent=0 // loop_header
    %s13 = sphi 0, %s17
    %p14 = scmp.ge.s32.totalorder %s13, 18
    %s20 = sphi 0, %s39
    %s21 = sphi 0, %s35
    %s22 = sphi 0, %s31
    %s23 = sphi 0, %s20
    %s24 = sphi 0, %s21
    %s25 = sphi 0, %s22
    %s26 = sphi 0, %s23
    %s27 = sphi 0, %s24
    %s28 = sphi 0, %s25
    %s42 = sphi 0, %s44
    %s45 = sphi 0, %s42
    %s46 = sphi 0, %s45
    %s62 = sphi 0, %s46
    %s70 = sphi 0, %s72
    %s73 = sphi 0, %s70
    %s74 = sphi 0, %s73
    %s90 = sphi 0, %s74
    %s98 = sphi 0, %s100
    %s101 = sphi 0, %s98
    %s102 = sphi 0, %s101
    %s118 = sphi 0, %s102
    %s124 = sphi 0, %s126
    %s127 = sphi 0, %s124
    %s128 = sphi 0, %s127
    %s144 = sphi 0, %s128
    %s150 = sphi 0, %s152
    %s153 = sphi 0, %s150
    %s154 = sphi 0, %s153
    %s170 = sphi 0, %s154
    %s176 = sphi 0, %s178
    %s179 = sphi 0, %s176
    %s180 = sphi 0, %s179
    %s196 = sphi 0, %s180
    %s202 = sphi 0, %s204
    %s205 = sphi 0, %s202
    %s206 = sphi 0, %s205
    %s222 = sphi 0, %s206
    %s232 = sphi 0, %s234
    %s235 = sphi 0, %s232
    %s236 = sphi 0, %s235
    %s252 = sphi 0, %s236
  $region4: #{setpred4re_forward.3} parent=0 // loop_header_branch
    %16 = sbr.rel (%p14) target = $region8
  $region5: #{setpred4re_forward.3} parent=0 // loop_body
    %s18 = ssub.s32 %s13, 1
    %s19 = ssub.s32 %s13, 2
    %s29 = sadd.s32 1, %s22
    %p30 = scmp.ge.s32.totalorder %s29, 1
    %s31 = scalar_select %p30, 0, %s29
    %s32 = sadd.s32 1, %s21
    %s33 = scalar_select %p30, %s32, %s21
    %p34 = scmp.ge.s32.totalorder %s33, 2
    %s35 = scalar_select %p34, 0, %s33
    %s36 = sadd.s32 1, %s20
    %s37 = scalar_select %p34, %s36, %s20
    %p38 = scmp.ge.s32.totalorder %s37, 8
    %s39 = scalar_select %p38, 0, %s37
    %s40 = ssub.s32 %s21, %s35
    %p41 = scmp.eq.s32.totalorder %s40, 0
    %s43 = sadd.s32 %s42, 1
    %s44 = scalar_select %p41, %s42, %s43
    %p47 = pneg %p41
    %p48 = scmp.eq.s32.totalorder %s13, 15
    %p49 = por %p47, %p48
    %p50 = scmp.ne.s32.totalorder %s42, %s45
    %p51 = scmp.eq.s32.totalorder %s13, 0
    %p52 = por %p50, %p51
    %p53 = scmp.ne.s32.totalorder %s42, %s45
    %p54 = scmp.eq.s32.totalorder %s18, 15
    %p55 = por %p53, %p54
    %p56 = scmp.ne.s32.totalorder %s45, %s46
    %p57 = scmp.eq.s32.totalorder %s18, 0
    %p58 = por %p56, %p57
    %p59 = scmp.ne.s32.totalorder %s45, %s46
    %p60 = scmp.eq.s32.totalorder %s19, 15
    %p61 = por %p59, %p60
    %p63 = scmp.ne.s32.totalorder %s46, %s62
    %p64 = scmp.eq.s32.totalorder %s19, 0
    %p65 = por %p63, %p64
    %s66 = ssub.s32 %s21, %s35
    %s67 = ssub.s32 %s22, %s31
    %s68 = sor.u32 %s66, %s67
    %p69 = scmp.eq.s32.totalorder %s68, 0
    %s71 = sadd.s32 %s70, 1
    %s72 = scalar_select %p69, %s70, %s71
    %p75 = pneg %p69
    %p76 = scmp.eq.s32.totalorder %s13, 15
    %p77 = por %p75, %p76
    %p78 = scmp.ne.s32.totalorder %s70, %s73
    %p79 = scmp.eq.s32.totalorder %s13, 0
    %p80 = por %p78, %p79
    %p81 = scmp.ne.s32.totalorder %s70, %s73
    %p82 = scmp.eq.s32.totalorder %s18, 15
    %p83 = por %p81, %p82
    %p84 = scmp.ne.s32.totalorder %s73, %s74
    %p85 = scmp.eq.s32.totalorder %s18, 0
    %p86 = por %p84, %p85
    %p87 = scmp.ne.s32.totalorder %s73, %s74
    %p88 = scmp.eq.s32.totalorder %s19, 15
    %p89 = por %p87, %p88
    %p91 = scmp.ne.s32.totalorder %s74, %s90
    %p92 = scmp.eq.s32.totalorder %s19, 0
    %p93 = por %p91, %p92
    %s94 = ssub.s32 %s21, %s35
    %s95 = ssub.s32 %s22, %s31
    %s96 = sor.u32 %s94, %s95
    %p97 = scmp.eq.s32.totalorder %s96, 0
    %s99 = sadd.s32 %s98, 1
    %s100 = scalar_select %p97, %s98, %s99
    %p103 = pneg %p97
    %p104 = scmp.eq.s32.totalorder %s13, 15
    %p105 = por %p103, %p104
    %p106 = scmp.ne.s32.totalorder %s98, %s101
    %p107 = scmp.eq.s32.totalorder %s13, 0
    %p108 = por %p106, %p107
    %p109 = scmp.ne.s32.totalorder %s98, %s101
    %p110 = scmp.eq.s32.totalorder %s18, 15
    %p111 = por %p109, %p110
    %p112 = scmp.ne.s32.totalorder %s101, %s102
    %p113 = scmp.eq.s32.totalorder %s18, 0
    %p114 = por %p112, %p113
    %p115 = scmp.ne.s32.totalorder %s101, %s102
    %p116 = scmp.eq.s32.totalorder %s19, 15
    %p117 = por %p115, %p116
    %p119 = scmp.ne.s32.totalorder %s102, %s118
    %p120 = scmp.eq.s32.totalorder %s19, 0
    %p121 = por %p119, %p120
    %s122 = ssub.s32 %s20, %s39
    %p123 = scmp.eq.s32.totalorder %s122, 0
    %s125 = sadd.s32 %s124, 1
    %s126 = scalar_select %p123, %s124, %s125
    %p129 = pneg %p123
    %p130 = scmp.eq.s32.totalorder %s13, 15
    %p131 = por %p129, %p130
    %p132 = scmp.ne.s32.totalorder %s124, %s127
    %p133 = scmp.eq.s32.totalorder %s13, 0
    %p134 = por %p132, %p133
    %p135 = scmp.ne.s32.totalorder %s124, %s127
    %p136 = scmp.eq.s32.totalorder %s18, 15
    %p137 = por %p135, %p136
    %p138 = scmp.ne.s32.totalorder %s127, %s128
    %p139 = scmp.eq.s32.totalorder %s18, 0
    %p140 = por %p138, %p139
    %p141 = scmp.ne.s32.totalorder %s127, %s128
    %p142 = scmp.eq.s32.totalorder %s19, 15
    %p143 = por %p141, %p142
    %p145 = scmp.ne.s32.totalorder %s128, %s144
    %p146 = scmp.eq.s32.totalorder %s19, 0
    %p147 = por %p145, %p146
    %s148 = ssub.s32 %s20, %s39
    %p149 = scmp.eq.s32.totalorder %s148, 0
    %s151 = sadd.s32 %s150, 1
    %s152 = scalar_select %p149, %s150, %s151
    %p155 = pneg %p149
    %p156 = scmp.eq.s32.totalorder %s13, 15
    %p157 = por %p155, %p156
    %p158 = scmp.ne.s32.totalorder %s150, %s153
    %p159 = scmp.eq.s32.totalorder %s13, 0
    %p160 = por %p158, %p159
    %p161 = scmp.ne.s32.totalorder %s150, %s153
    %p162 = scmp.eq.s32.totalorder %s18, 15
    %p163 = por %p161, %p162
    %p164 = scmp.ne.s32.totalorder %s153, %s154
    %p165 = scmp.eq.s32.totalorder %s18, 0
    %p166 = por %p164, %p165
    %p167 = scmp.ne.s32.totalorder %s153, %s154
    %p168 = scmp.eq.s32.totalorder %s19, 15
    %p169 = por %p167, %p168
    %p171 = scmp.ne.s32.totalorder %s154, %s170
    %p172 = scmp.eq.s32.totalorder %s19, 0
    %p173 = por %p171, %p172
    %s174 = ssub.s32 %s20, %s39
    %p175 = scmp.eq.s32.totalorder %s174, 0
    %s177 = sadd.s32 %s176, 1
    %s178 = scalar_select %p175, %s176, %s177
    %p181 = pneg %p175
    %p182 = scmp.eq.s32.totalorder %s13, 15
    %p183 = por %p181, %p182
    %p184 = scmp.ne.s32.totalorder %s176, %s179
    %p185 = scmp.eq.s32.totalorder %s13, 0
    %p186 = por %p184, %p185
    %p187 = scmp.ne.s32.totalorder %s176, %s179
    %p188 = scmp.eq.s32.totalorder %s18, 15
    %p189 = por %p187, %p188
    %p190 = scmp.ne.s32.totalorder %s179, %s180
    %p191 = scmp.eq.s32.totalorder %s18, 0
    %p192 = por %p190, %p191
    %p193 = scmp.ne.s32.totalorder %s179, %s180
    %p194 = scmp.eq.s32.totalorder %s19, 15
    %p195 = por %p193, %p194
    %p197 = scmp.ne.s32.totalorder %s180, %s196
    %p198 = scmp.eq.s32.totalorder %s19, 0
    %p199 = por %p197, %p198
    %s200 = ssub.s32 %s20, %s39
    %p201 = scmp.eq.s32.totalorder %s200, 0
    %s203 = sadd.s32 %s202, 1
    %s204 = scalar_select %p201, %s202, %s203
    %p207 = pneg %p201
    %p208 = scmp.eq.s32.totalorder %s13, 15
    %p209 = por %p207, %p208
    %p210 = scmp.ne.s32.totalorder %s202, %s205
    %p211 = scmp.eq.s32.totalorder %s13, 0
    %p212 = por %p210, %p211
    %p213 = scmp.ne.s32.totalorder %s202, %s205
    %p214 = scmp.eq.s32.totalorder %s18, 15
    %p215 = por %p213, %p214
    %p216 = scmp.ne.s32.totalorder %s205, %s206
    %p217 = scmp.eq.s32.totalorder %s18, 0
    %p218 = por %p216, %p217
    %p219 = scmp.ne.s32.totalorder %s205, %s206
    %p220 = scmp.eq.s32.totalorder %s19, 15
    %p221 = por %p219, %p220
    %p223 = scmp.ne.s32.totalorder %s206, %s222
    %p224 = scmp.eq.s32.totalorder %s19, 0
    %p225 = por %p223, %p224
    %s226 = ssub.s32 %s20, %s39
    %s227 = ssub.s32 %s21, %s35
    %s228 = sor.u32 %s226, %s227
    %s229 = ssub.s32 %s22, %s31
    %s230 = sor.u32 %s228, %s229
    %p231 = scmp.eq.s32.totalorder %s230, 0
    %s233 = sadd.s32 %s232, 1
    %s234 = scalar_select %p231, %s232, %s233
    %p237 = pneg %p231
    %p238 = scmp.eq.s32.totalorder %s13, 15
    %p239 = por %p237, %p238
    %p240 = scmp.ne.s32.totalorder %s232, %s235
    %p241 = scmp.eq.s32.totalorder %s13, 0
    %p242 = por %p240, %p241
    %p243 = scmp.ne.s32.totalorder %s232, %s235
    %p244 = scmp.eq.s32.totalorder %s18, 15
    %p245 = por %p243, %p244
    %p246 = scmp.ne.s32.totalorder %s235, %s236
    %p247 = scmp.eq.s32.totalorder %s18, 0
    %p248 = por %p246, %p247
    %p249 = scmp.ne.s32.totalorder %s235, %s236
    %p250 = scmp.eq.s32.totalorder %s19, 15
    %p251 = por %p249, %p250
    %p253 = scmp.ne.s32.totalorder %s236, %s252
    %p254 = scmp.eq.s32.totalorder %s19, 0
    %p255 = por %p253, %p254
    %p256 = scmp.le.s32.totalorder 1, %s13
    %p257 = scmp.lt.s32.totalorder %s13, 17
    %p258 = pnand %p256, %p257
    %p259 = pneg %p258
    // Predicated region
    $region9: #{setpred4re_forward.3} parent=5 // pred_check
      _
    $region10: #{setpred4re_forward.3} parent=5 // pred_check_branch
      %261 = sbr.rel (%p258) target = $region12
    $region11: #{setpred4re_forward.3} parent=5 // pred_region
      %s262 = ssub.s32 %s13, 1
    $region12: #{setpred4re_forward.3} parent=5 // pred_fallthru
      _
    %p263 = scmp.lt.s32.totalorder %s13, 16
    // Predicated region
    $region13: #{setpred4re_forward.3} parent=5 // pred_check
      %p264 = pneg %p263
    $region14: #{setpred4re_forward.3} parent=5 // pred_check_branch
      %266 = sbr.rel (%p264) target = $region16
    $region15: #{setpred4re_forward.3} parent=5 // pred_region
      // Predicated region
      $region17: #{setpred4re_forward.3} parent=15 // pred_check
        %p267 = pneg %p52
      $region18: #{setpred4re_forward.3} parent=15 // pred_check_branch
        %269 = sbr.rel (%p267) target = $region20
      $region19: #{setpred4re_forward.3} parent=15 // pred_region
        %p270 = scmp.lt.s32.totalorder %s21, 1
        %s271 = scalar_select %p270, %s21, 1
        %s272 = smul.addr %s271, 4
        %s273 = smul.addr %s272, 8
        %s274 = scalar_lea.vmem %s0, %s273
      $region20: #{setpred4re_forward.3} parent=15 // pred_fallthru
        _
      // Predicated region
      $region21: #{setpred4re_forward.3} parent=15 // pred_check
        %p275 = pneg %p80
      $region22: #{setpred4re_forward.3} parent=15 // pred_check_branch
        %277 = sbr.rel (%p275) target = $region24
      $region23: #{setpred4re_forward.3} parent=15 // pred_region
        %p278 = scmp.lt.s32.totalorder %s21, 1
        %s279 = scalar_select %p278, %s21, 1
        %p280 = scmp.lt.s32.totalorder %s22, 0
        %s281 = scalar_select %p280, %s22, 0
        %s282 = smul.addr %s279, 4
        %s283 = sadd.s32 %s281, %s282
        %s284 = smul.addr %s283, 8
        %s285 = scalar_lea.vmem %s1, %s284
      $region24: #{setpred4re_forward.3} parent=15 // pred_fallthru
        _
      // Predicated region
      $region25: #{setpred4re_forward.3} parent=15 // pred_check
        %p286 = pneg %p108
      $region26: #{setpred4re_forward.3} parent=15 // pred_check_branch
        %288 = sbr.rel (%p286) target = $region28
      $region27: #{setpred4re_forward.3} parent=15 // pred_region
        %p289 = scmp.lt.s32.totalorder %s21, 1
        %s290 = scalar_select %p289, %s21, 1
        %p291 = scmp.lt.s32.totalorder %s22, 0
        %s292 = scalar_select %p291, %s22, 0
        %s293 = sadd.s32 %s292, %s290
        %s294 = scalar_lea.vmem %s2, %s293
      $region28: #{setpred4re_forward.3} parent=15 // pred_fallthru
        _
      // Predicated region
      $region29: #{setpred4re_forward.3} parent=15 // pred_check
        %p295 = pneg %p134
      $region30: #{setpred4re_forward.3} parent=15 // pred_check_branch
        %297 = sbr.rel (%p295) target = $region32
      $region31: #{setpred4re_forward.3} parent=15 // pred_region
        %p298 = scmp.lt.s32.totalorder %s20, 7
        %s299 = scalar_select %p298, %s20, 7
        %s300 = smul.addr %s299, 4
        %s301 = smul.addr %s300, 8
        %s302 = scalar_lea.vmem %s3, %s301
      $region32: #{setpred4re_forward.3} parent=15 // pred_fallthru
        _
      // Predicated region
      $region33: #{setpred4re_forward.3} parent=15 // pred_check
        %p303 = pneg %p160
      $region34: #{setpred4re_forward.3} parent=15 // pred_check_branch
        %305 = sbr.rel (%p303) target = $region36
      $region35: #{setpred4re_forward.3} parent=15 // pred_region
        %p306 = scmp.lt.s32.totalorder %s20, 7
        %s307 = scalar_select %p306, %s20, 7
        %s308 = smul.addr %s307, 4
        %s309 = smul.addr %s308, 8
        %s310 = scalar_lea.vmem %s4, %s309
      $region36: #{setpred4re_forward.3} parent=15 // pred_fallthru
        _
      // Predicated region
      $region37: #{setpred4re_forward.3} parent=15 // pred_check
        %p311 = pneg %p186
      $region38: #{setpred4re_forward.3} parent=15 // pred_check_branch
        %313 = sbr.rel (%p311) target = $region40
      $region39: #{setpred4re_forward.3} parent=15 // pred_region
        %p314 = scmp.lt.s32.totalorder %s20, 7
        %s315 = scalar_select %p314, %s20, 7
        %s316 = smul.addr %s315, 4
        %s317 = smul.addr %s316, 8
        %s318 = scalar_lea.vmem %s5, %s317
      $region40: #{setpred4re_forward.3} parent=15 // pred_fallthru
        _
      // Predicated region
      $region41: #{setpred4re_forward.3} parent=15 // pred_check
        %p319 = pneg %p212
      $region42: #{setpred4re_forward.3} parent=15 // pred_check_branch
        %321 = sbr.rel (%p319) target = $region44
      $region43: #{setpred4re_forward.3} parent=15 // pred_region
        %p322 = scmp.lt.s32.totalorder %s20, 7
        %s323 = scalar_select %p322, %s20, 7
        %s324 = scalar_lea.vmem %s6, %s323
      $region44: #{setpred4re_forward.3} parent=15 // pred_fallthru
        _
    $region16: #{setpred4re_forward.3} parent=5 // pred_fallthru
      _
    %p325 = scmp.le.s32.totalorder 1, %s13
    %p326 = scmp.lt.s32.totalorder %s13, 17
    %p327 = pnand %p325, %p326
    %p328 = pneg %p327
    // Predicated region
    $region45: #{setpred4re_forward.3} parent=5 // pred_check
      _
    $region46: #{setpred4re_forward.3} parent=5 // pred_check_branch
      %330 = sbr.rel (%p327) target = $region48
    $region47: #{setpred4re_forward.3} parent=5 // pred_region
      %s331 = ssub.s32 %s13, 1
      %p332 = scmp.lt.s32.totalorder %s24, 1
      %s333 = scalar_select %p332, %s24, 1
      %s334 = smul.addr %s333, 4
      %s335 = smul.addr %s334, 8
      %s336 = scalar_lea.vmem %s0, %s335
      %p337 = pneg %p58
      %p338 = pneg %p55
      %p339 = scmp.lt.s32.totalorder %s24, 1
      %s340 = scalar_select %p339, %s24, 1
      %p341 = scmp.lt.s32.totalorder %s25, 0
      %s342 = scalar_select %p341, %s25, 0
      %s343 = smul.addr %s340, 4
      %s344 = sadd.s32 %s342, %s343
      %s345 = smul.addr %s344, 8
      %s346 = scalar_lea.vmem %s1, %s345
      %p347 = pneg %p86
      %p348 = pneg %p83
      %p349 = scmp.lt.s32.totalorder %s24, 1
      %s350 = scalar_select %p349, %s24, 1
      %p351 = scmp.lt.s32.totalorder %s25, 0
      %s352 = scalar_select %p351, %s25, 0
      %s353 = sadd.s32 %s352, %s350
      %s354 = scalar_lea.vmem %s2, %s353
      %p355 = pneg %p114
      %p356 = pneg %p111
      %p357 = scmp.lt.s32.totalorder %s23, 7
      %s358 = scalar_select %p357, %s23, 7
      %s359 = smul.addr %s358, 4
      %s360 = smul.addr %s359, 8
      %s361 = scalar_lea.vmem %s3, %s360
      %p362 = pneg %p140
      %p363 = pneg %p137
      %p364 = scmp.lt.s32.totalorder %s23, 7
      %s365 = scalar_select %p364, %s23, 7
      %s366 = smul.addr %s365, 4
      %s367 = smul.addr %s366, 8
      %s368 = scalar_lea.vmem %s4, %s367
      %p369 = pneg %p166
      %p370 = pneg %p163
      %p371 = scmp.lt.s32.totalorder %s23, 7
      %s372 = scalar_select %p371, %s23, 7
      %s373 = smul.addr %s372, 4
      %s374 = smul.addr %s373, 8
      %s375 = scalar_lea.vmem %s5, %s374
      %p376 = pneg %p192
      %p377 = pneg %p189
      %p378 = scmp.lt.s32.totalorder %s23, 7
      %s379 = scalar_select %p378, %s23, 7
      %s380 = scalar_lea.vmem %s6, %s379
      %p381 = pneg %p218
      %p382 = pneg %p215
      %p383 = pneg %p248
      %p384 = pneg %p245
      %p385 = scmp.lt.s32.totalorder %s23, 7
      %s386 = scalar_select %p385, %s23, 7
      %p387 = scmp.lt.s32.totalorder %s24, 1
      %s388 = scalar_select %p387, %s24, 1
      %p389 = scmp.lt.s32.totalorder %s25, 0
      %s390 = scalar_select %p389, %s25, 0
      %s391 = sadd.s32 %s390, %s388
      %s392 = smul.addr %s386, 2
      %s393 = sadd.s32 %s391, %s392
      %s394 = smul.addr %s393, 8
      %s395 = scalar_lea.vmem %s7, %s394
      %p396 = scmp.lt.s32.totalorder %s24, 1
      %s397 = scalar_select %p396, %s24, 1
      %s398 = smul.addr %s397, 4
      %s399 = smul.addr %s398, 8
      %s400 = scalar_lea.vmem %s0, %s399
      %p401 = scmp.lt.s32.totalorder %s24, 1
      %s402 = scalar_select %p401, %s24, 1
      %p403 = scmp.lt.s32.totalorder %s25, 0
      %s404 = scalar_select %p403, %s25, 0
      %s405 = smul.addr %s402, 4
      %s406 = sadd.s32 %s404, %s405
      %s407 = smul.addr %s406, 8
      %s408 = scalar_lea.vmem %s1, %s407
      %p409 = scmp.lt.s32.totalorder %s24, 1
      %s410 = scalar_select %p409, %s24, 1
      %p411 = scmp.lt.s32.totalorder %s25, 0
      %s412 = scalar_select %p411, %s25, 0
      %s413 = sadd.s32 %s412, %s410
      %s414 = scalar_lea.vmem %s2, %s413
      %p415 = scmp.lt.s32.totalorder %s23, 7
      %s416 = scalar_select %p415, %s23, 7
      %s417 = smul.addr %s416, 4
      %s418 = smul.addr %s417, 8
      %s419 = scalar_lea.vmem %s3, %s418
      %p420 = scmp.lt.s32.totalorder %s23, 7
      %s421 = scalar_select %p420, %s23, 7
      %s422 = smul.addr %s421, 4
      %s423 = smul.addr %s422, 8
      %s424 = scalar_lea.vmem %s4, %s423
      %p425 = scmp.lt.s32.totalorder %s23, 7
      %s426 = scalar_select %p425, %s23, 7
      %s427 = smul.addr %s426, 4
      %s428 = smul.addr %s427, 8
      %s429 = scalar_lea.vmem %s5, %s428
      %p430 = scmp.lt.s32.totalorder %s23, 7
      %s431 = scalar_select %p430, %s23, 7
      %s432 = scalar_lea.vmem %s6, %s431
      %p433 = scmp.lt.s32.totalorder %s23, 7
      %s434 = scalar_select %p433, %s23, 7
      %p435 = scmp.lt.s32.totalorder %s24, 1
      %s436 = scalar_select %p435, %s24, 1
      %p437 = scmp.lt.s32.totalorder %s25, 0
      %s438 = scalar_select %p437, %s25, 0
      %s439 = sadd.s32 %s438, %s436
      %s440 = smul.addr %s434, 2
      %s441 = sadd.s32 %s439, %s440
      %s442 = smul.addr %s441, 8
      %s443 = scalar_lea.vmem %s7, %s442
      %p444 = scmp.eq.s32.totalorder %s25, 0
      // Predicated region
      $region49: #{setpred4re_forward.3} parent=47 // pred_check
        %p445 = pneg %p444
      $region50: #{setpred4re_forward.3} parent=47 // pred_check_branch
        %447 = sbr.rel (%p445) target = $region52
      $region51: #{setpred4re_forward.3} parent=47 // pred_region
        %v448 = vld [vmem:[%s419] sm:$0xff]
        %v449 = vld [vmem:[%s419 + $0x8] sm:$0xff]
        %v450 = vld [vmem:[%s419 + $0x10] sm:$0xff]
        %v451 = vld [vmem:[%s419 + $0x18] sm:$0xff]
        %v452 = vld [vmem:[%s400] sm:$0xff]
        %v453 = vld [vmem:[%s400 + $0x8] sm:$0xff]
        %v454 = vld [vmem:[%s400 + $0x10] sm:$0xff]
        %v455 = vld [vmem:[%s400 + $0x18] sm:$0xff]
        %v456 = vld [vmem:[%s424] sm:$0xff]
        %v457 = vld [vmem:[%s424 + $0x8] sm:$0xff]
        %v458 = vld [vmem:[%s424 + $0x10] sm:$0xff]
        %v459 = vld [vmem:[%s424 + $0x18] sm:$0xff]
        %461 = vset.pattern.permute.xlu0 0
        %462 = vperm.xlu0 %461, %v456
        %v463 = vpop.permute.xlu0 %462
        %466 = vset.pattern.permute.xlu0 0
        %467 = vperm.xlu0 %466, %v457
        %v468 = vpop.permute.xlu0 %467
        %471 = vset.pattern.permute.xlu0 0
        %472 = vperm.xlu0 %471, %v458
        %v473 = vpop.permute.xlu0 %472
        %476 = vset.pattern.permute.xlu0 0
        %477 = vperm.xlu0 %476, %v459
        %v478 = vpop.permute.xlu0 %477
        %vm480 = vcmask 261120
        %v482 = vsel %vm480, %v448, 0
        %v485 = vsel %vm480, %v449, 0
        %v488 = vsel %vm480, %v450, 0
        %v491 = vsel %vm480, %v451, 0
        %493 = vmatprep.subr.mxu0 0.0
        %494 = vmatpush1.msra.mxu0 %v452
        %495 = vmatprep.subr.mxu0 0.0
        %496 = vmatpush1.msra.mxu0 %v453
        %497 = vmatprep.subr.mxu0 0.0
        %498 = vmatpush1.msra.mxu0 %v454
        %499 = vmatprep.subr.mxu0 0.0
        %500 = vmatpush1.msra.mxu0 %v455
        %501 = vmatprep.subr.mxu0 0.0
        %502 = vmatpush1.msra.mxu0 0.0
        %503 = vmatprep.subr.mxu0 0.0
        %504 = vmatpush1.msra.mxu0 0.0
        %505 = vmatprep.subr.mxu0 0.0
        %506 = vmatpush1.msra.mxu0 0.0
        %507 = vmatprep.subr.mxu0 0.0
        %508 = vmatpush1.msra.mxu0 0.0
        %509 = vmatprep.subr.mxu0 0.0
        %510 = vmatpush1.msra.mxu0 0.0
        %511 = vmatprep.subr.mxu0 0.0
        %512 = vmatpush1.msra.mxu0 0.0
        %513 = vmatprep.subr.mxu0 0.0
        %514 = vmatpush1.msra.mxu0 0.0
        %515 = vmatprep.subr.mxu0 0.0
        %516 = vmatpush1.msra.mxu0 0.0
        %517 = vmatprep.subr.mxu0 0.0
        %518 = vmatpush1.msra.mxu0 0.0
        %519 = vmatprep.subr.mxu0 0.0
        %520 = vmatpush1.msra.mxu0 0.0
        %521 = vmatprep.subr.mxu0 0.0
        %522 = vmatpush1.msra.mxu0 0.0
        %523 = vmatprep.subr.mxu0 0.0
        %524 = vmatpush1.msra.mxu0 0.0
        %525 = vmatprep.subr.mxu0 0.0
        %526 = vmatpush1.msra.mxu0 0.0
        %527 = vmatprep.subr.mxu0 0.0
        %528 = vmatpush1.msra.mxu0 0.0
        %529 = vmatprep.subr.mxu0 0.0
        %530 = vmatpush1.msra.mxu0 0.0
        %531 = vmatprep.subr.mxu0 0.0
        %532 = vmatpush1.msra.mxu0 0.0
        %533 = vmatprep.subr.mxu0 0.0
        %534 = vmatpush1.msra.mxu0 0.0
        %535 = vmatprep.subr.mxu0 0.0
        %536 = vmatpush1.msra.mxu0 0.0
        %537 = vmatprep.subr.mxu0 0.0
        %538 = vmatpush1.msra.mxu0 0.0
        %539 = vmatprep.subr.mxu0 0.0
        %540 = vmatpush1.msra.mxu0 0.0
        %541 = vmatprep.subr.mxu0 0.0
        %542 = vmatpush1.msra.mxu0 0.0
        %543 = vmatprep.subr.mxu0 0.0
        %544 = vmatpush1.msra.mxu0 0.0
        %545 = vmatprep.subr.mxu0 0.0
        %546 = vmatpush1.msra.mxu0 0.0
        %547 = vmatprep.subr.mxu0 0.0
        %548 = vmatpush1.msra.mxu0 0.0
        %549 = vmatprep.subr.mxu0 0.0
        %550 = vmatpush1.msra.mxu0 0.0
        %551 = vmatprep.subr.mxu0 0.0
        %552 = vmatpush1.msra.mxu0 0.0
        %553 = vmatprep.subr.mxu0 0.0
        %554 = vmatpush1.msra.mxu0 0.0
        %555 = vmatprep.subr.mxu0 0.0
        %556 = vmatpush1.msra.mxu0 0.0
        %557 = vmatprep.mubr.f32.mxu0 0.0
        %558 = vmatmul.mubr.f32.gmra.mrb[0].mxu0 %v482
        %v559 = vpop.f32.mrb[0].mxu0
        %v560 = vadd.f32 %v463, %v559
        %v561 = vpop.f32.mrb[0].mxu0
        %562 = vmatprep.mubr.f32.mxu0 0.0
        %563 = vmatmul.mubr.f32.gmra.mrb[0].mxu0 %v485
        %v564 = vpop.f32.mrb[0].mxu0
        %v565 = vadd.f32 %v468, %v564
        %v566 = vpop.f32.mrb[0].mxu0
        %567 = vmatprep.mubr.f32.mxu0 0.0
        %568 = vmatmul.mubr.f32.gmra.mrb[0].mxu0 %v488
        %v569 = vpop.f32.mrb[0].mxu0
        %v570 = vadd.f32 %v473, %v569
        %v571 = vpop.f32.mrb[0].mxu0
        %572 = vmatprep.mubr.f32.mxu0 0.0
        %573 = vmatmul.mubr.f32.gmra.mrb[0].mxu0 %v491
        %v574 = vpop.f32.mrb[0].mxu0
        %v575 = vadd.f32 %v478, %v574
        %v576 = vpop.f32.mrb[0].mxu0
        %577 = vdwg.mxu0
        %vm578 = vcmask 64512
        %579 = vst.msk [vmem:[#allocation2] sm:$0xff] %vm578, %v560
        %580 = vst.msk [vmem:[#allocation2 + $0x8] sm:$0xff] %vm578, %v565
        %581 = vst.msk [vmem:[#allocation2 + $0x10] sm:$0xff] %vm578, %v570
        %582 = vst.msk [vmem:[#allocation2 + $0x18] sm:$0xff] %vm578, %v575
      $region52: #{setpred4re_forward.3} parent=47 // pred_fallthru
        _
      %v583 = vld [vmem:[%s429] sm:$0xff]
      %v584 = vld [vmem:[%s429 + $0x8] sm:$0xff]
      %v585 = vld [vmem:[%s429 + $0x10] sm:$0xff]
      %v586 = vld [vmem:[%s429 + $0x18] sm:$0xff]
      %v587 = vld [vmem:[%s408] sm:$0xff]
      %v588 = vld [vmem:[%s408 + $0x8] sm:$0xff]
      %v589 = vld [vmem:[%s408 + $0x10] sm:$0xff]
      %v590 = vld [vmem:[%s408 + $0x18] sm:$0xff]
      %vm591 = vcmask 261120
      %v593 = vsel %vm591, %v583, 0
      %v596 = vsel %vm591, %v584, 0
      %v599 = vsel %vm591, %v585, 0
      %v602 = vsel %vm591, %v586, 0
      %604 = vmatprep.subr.mxu0 0.0
      %605 = vmatpush1.msra.mxu0 %v587
      %606 = vmatprep.subr.mxu0 0.0
      %607 = vmatpush1.msra.mxu0 %v588
      %608 = vmatprep.subr.mxu0 0.0
      %609 = vmatpush1.msra.mxu0 %v589
      %610 = vmatprep.subr.mxu0 0.0
      %611 = vmatpush1.msra.mxu0 %v590
      %612 = vmatprep.subr.mxu0 0.0
      %613 = vmatpush1.msra.mxu0 0.0
      %614 = vmatprep.subr.mxu0 0.0
      %615 = vmatpush1.msra.mxu0 0.0
      %616 = vmatprep.subr.mxu0 0.0
      %617 = vmatpush1.msra.mxu0 0.0
      %618 = vmatprep.subr.mxu0 0.0
      %619 = vmatpush1.msra.mxu0 0.0
      %620 = vmatprep.subr.mxu0 0.0
      %621 = vmatpush1.msra.mxu0 0.0
      %622 = vmatprep.subr.mxu0 0.0
      %623 = vmatpush1.msra.mxu0 0.0
      %624 = vmatprep.subr.mxu0 0.0
      %625 = vmatpush1.msra.mxu0 0.0
      %626 = vmatprep.subr.mxu0 0.0
      %627 = vmatpush1.msra.mxu0 0.0
      %628 = vmatprep.subr.mxu0 0.0
      %629 = vmatpush1.msra.mxu0 0.0
      %630 = vmatprep.subr.mxu0 0.0
      %631 = vmatpush1.msra.mxu0 0.0
      %632 = vmatprep.subr.mxu0 0.0
      %633 = vmatpush1.msra.mxu0 0.0
      %634 = vmatprep.subr.mxu0 0.0
      %635 = vmatpush1.msra.mxu0 0.0
      %636 = vmatprep.subr.mxu0 0.0
      %637 = vmatpush1.msra.mxu0 0.0
      %638 = vmatprep.subr.mxu0 0.0
      %639 = vmatpush1.msra.mxu0 0.0
      %640 = vmatprep.subr.mxu0 0.0
      %641 = vmatpush1.msra.mxu0 0.0
      %642 = vmatprep.subr.mxu0 0.0
      %643 = vmatpush1.msra.mxu0 0.0
      %644 = vmatprep.subr.mxu0 0.0
      %645 = vmatpush1.msra.mxu0 0.0
      %646 = vmatprep.subr.mxu0 0.0
      %647 = vmatpush1.msra.mxu0 0.0
      %648 = vmatprep.subr.mxu0 0.0
      %649 = vmatpush1.msra.mxu0 0.0
      %650 = vmatprep.subr.mxu0 0.0
      %651 = vmatpush1.msra.mxu0 0.0
      %652 = vmatprep.subr.mxu0 0.0
      %653 = vmatpush1.msra.mxu0 0.0
      %654 = vmatprep.subr.mxu0 0.0
      %655 = vmatpush1.msra.mxu0 0.0
      %656 = vmatprep.subr.mxu0 0.0
      %657 = vmatpush1.msra.mxu0 0.0
      %658 = vmatprep.subr.mxu0 0.0
      %659 = vmatpush1.msra.mxu0 0.0
      %660 = vmatprep.subr.mxu0 0.0
      %661 = vmatpush1.msra.mxu0 0.0
      %662 = vmatprep.subr.mxu0 0.0
      %663 = vmatpush1.msra.mxu0 0.0
      %664 = vmatprep.subr.mxu0 0.0
      %665 = vmatpush1.msra.mxu0 0.0
      %666 = vmatprep.subr.mxu0 0.0
      %667 = vmatpush1.msra.mxu0 0.0
      %668 = vmatprep.mubr.f32.mxu0 0.0
      %669 = vmatmul.mubr.f32.gmra.mrb[0].mxu0 %v593
      %v670 = vpop.f32.mrb[0].mxu0
      %v671 = vadd.f32 0.0, %v670
      %v672 = vpop.f32.mrb[0].mxu0
      %673 = vmatprep.mubr.f32.mxu0 0.0
      %674 = vmatmul.mubr.f32.gmra.mrb[0].mxu0 %v596
      %v675 = vpop.f32.mrb[0].mxu0
      %v676 = vadd.f32 0.0, %v675
      %v677 = vpop.f32.mrb[0].mxu0
      %678 = vmatprep.mubr.f32.mxu0 0.0
      %679 = vmatmul.mubr.f32.gmra.mrb[0].mxu0 %v599
      %v680 = vpop.f32.mrb[0].mxu0
      %v681 = vadd.f32 0.0, %v680
      %v682 = vpop.f32.mrb[0].mxu0
      %683 = vmatprep.mubr.f32.mxu0 0.0
      %684 = vmatmul.mubr.f32.gmra.mrb[0].mxu0 %v602
      %v685 = vpop.f32.mrb[0].mxu0
      %v686 = vadd.f32 0.0, %v685
      %v687 = vpop.f32.mrb[0].mxu0
      %688 = vdwg.mxu0
      %v689 = vld [vmem:[%s432] sm:$0x1]
      %v690 = vld [vmem:[%s414] sm:$0x1]
      %vm691 = vcmp.gt.f32.partialorder %v690, 0.0
      %v692 = vld [vmem:[#allocation2] sm:$0xff]
      %v693 = vld [vmem:[#allocation2 + $0x8] sm:$0xff]
      %v694 = vld [vmem:[#allocation2 + $0x10] sm:$0xff]
      %v695 = vld [vmem:[#allocation2 + $0x18] sm:$0xff]
      %697 = vset.pattern.permute.xlu0 0
      %698 = vperm.xlu0 %697, %v692
      %v699 = vpop.permute.xlu0 %698
      %702 = vset.pattern.permute.xlu0 0
      %703 = vperm.xlu0 %702, %v693
      %v704 = vpop.permute.xlu0 %703
      %707 = vset.pattern.permute.xlu0 0
      %708 = vperm.xlu0 %707, %v694
      %v709 = vpop.permute.xlu0 %708
      %712 = vset.pattern.permute.xlu0 0
      %713 = vperm.xlu0 %712, %v695
      %v714 = vpop.permute.xlu0 %713
      %v716 = vadd.f32 %v699, %v671
      %v717 = vadd.f32 %v704, %v676
      %v718 = vadd.f32 %v709, %v681
      %v719 = vadd.f32 %v714, %v686
      %v720 = vtanh.pop %v716
      %v721 = vtanh.pop %v717
      %v722 = vtanh.pop %v718
      %v723 = vtanh.pop %v719
      %v725 = vsel %vm591, %v689, 0
      %727 = vmatprep.subr.mxu0 0.0
      %728 = vmatpush1.msra.mxu0 %v720
      %729 = vmatprep.subr.mxu0 0.0
      %730 = vmatpush1.msra.mxu0 %v721
      %731 = vmatprep.subr.mxu0 0.0
      %732 = vmatpush1.msra.mxu0 %v722
      %733 = vmatprep.subr.mxu0 0.0
      %734 = vmatpush1.msra.mxu0 %v723
      %735 = vmatprep.subr.mxu0 0.0
      %736 = vmatpush1.msra.mxu0 0.0
      %737 = vmatprep.subr.mxu0 0.0
      %738 = vmatpush1.msra.mxu0 0.0
      %739 = vmatprep.subr.mxu0 0.0
      %740 = vmatpush1.msra.mxu0 0.0
      %741 = vmatprep.subr.mxu0 0.0
      %742 = vmatpush1.msra.mxu0 0.0
      %743 = vmatprep.subr.mxu0 0.0
      %744 = vmatpush1.msra.mxu0 0.0
      %745 = vmatprep.subr.mxu0 0.0
      %746 = vmatpush1.msra.mxu0 0.0
      %747 = vmatprep.subr.mxu0 0.0
      %748 = vmatpush1.msra.mxu0 0.0
      %749 = vmatprep.subr.mxu0 0.0
      %750 = vmatpush1.msra.mxu0 0.0
      %751 = vmatprep.subr.mxu0 0.0
      %752 = vmatpush1.msra.mxu0 0.0
      %753 = vmatprep.subr.mxu0 0.0
      %754 = vmatpush1.msra.mxu0 0.0
      %755 = vmatprep.subr.mxu0 0.0
      %756 = vmatpush1.msra.mxu0 0.0
      %757 = vmatprep.subr.mxu0 0.0
      %758 = vmatpush1.msra.mxu0 0.0
      %759 = vmatprep.subr.mxu0 0.0
      %760 = vmatpush1.msra.mxu0 0.0
      %761 = vmatprep.subr.mxu0 0.0
      %762 = vmatpush1.msra.mxu0 0.0
      %763 = vmatprep.subr.mxu0 0.0
      %764 = vmatpush1.msra.mxu0 0.0
      %765 = vmatprep.subr.mxu0 0.0
      %766 = vmatpush1.msra.mxu0 0.0
      %767 = vmatprep.subr.mxu0 0.0
      %768 = vmatpush1.msra.mxu0 0.0
      %769 = vmatprep.subr.mxu0 0.0
      %770 = vmatpush1.msra.mxu0 0.0
      %771 = vmatprep.subr.mxu0 0.0
      %772 = vmatpush1.msra.mxu0 0.0
      %773 = vmatprep.subr.mxu0 0.0
      %774 = vmatpush1.msra.mxu0 0.0
      %775 = vmatprep.subr.mxu0 0.0
      %776 = vmatpush1.msra.mxu0 0.0
      %777 = vmatprep.subr.mxu0 0.0
      %778 = vmatpush1.msra.mxu0 0.0
      %779 = vmatprep.subr.mxu0 0.0
      %780 = vmatpush1.msra.mxu0 0.0
      %781 = vmatprep.subr.mxu0 0.0
      %782 = vmatpush1.msra.mxu0 0.0
      %783 = vmatprep.subr.mxu0 0.0
      %784 = vmatpush1.msra.mxu0 0.0
      %785 = vmatprep.subr.mxu0 0.0
      %786 = vmatpush1.msra.mxu0 0.0
      %787 = vmatprep.subr.mxu0 0.0
      %788 = vmatpush1.msra.mxu0 0.0
      %789 = vmatprep.subr.mxu0 0.0
      %790 = vmatpush1.msra.mxu0 0.0
      %791 = vmatprep.mubr.f32.mxu0 0.0
      %792 = vmatmul.mubr.f32.gmra.mrb[0].mxu0 %v725
      %v793 = vpop.f32.mrb[0].mxu0
      %v794 = vadd.f32 0.0, %v793
      %v795 = vpop.f32.mrb[0].mxu0
      %796 = vdwg.mxu0
      %797 = vset.pattern.permute.xlu0 1
      %798 = vperm.xlu0 %797, %v692
      %v799 = vpop.permute.xlu0 %798
      %801 = vset.pattern.permute.xlu0 1
      %802 = vperm.xlu0 %801, %v693
      %v803 = vpop.permute.xlu0 %802
      %805 = vset.pattern.permute.xlu0 1
      %806 = vperm.xlu0 %805, %v694
      %v807 = vpop.permute.xlu0 %806
      %809 = vset.pattern.permute.xlu0 1
      %810 = vperm.xlu0 %809, %v695
      %v811 = vpop.permute.xlu0 %810
      %v813 = vadd.f32 %v799, %v671
      %v814 = vadd.f32 %v803, %v676
      %v815 = vadd.f32 %v807, %v681
      %v816 = vadd.f32 %v811, %v686
      %v817 = vtanh.pop %v813
      %v818 = vtanh.pop %v814
      %v819 = vtanh.pop %v815
      %v820 = vtanh.pop %v816
      %821 = vmatprep.subr.mxu0 0.0
      %822 = vmatpush1.msra.mxu0 %v817
      %823 = vmatprep.subr.mxu0 0.0
      %824 = vmatpush1.msra.mxu0 %v818
      %825 = vmatprep.subr.mxu0 0.0
      %826 = vmatpush1.msra.mxu0 %v819
      %827 = vmatprep.subr.mxu0 0.0
      %828 = vmatpush1.msra.mxu0 %v820
      %829 = vmatprep.subr.mxu0 0.0
      %830 = vmatpush1.msra.mxu0 0.0
      %831 = vmatprep.subr.mxu0 0.0
      %832 = vmatpush1.msra.mxu0 0.0
      %833 = vmatprep.subr.mxu0 0.0
      %834 = vmatpush1.msra.mxu0 0.0
      %835 = vmatprep.subr.mxu0 0.0
      %836 = vmatpush1.msra.mxu0 0.0
      %837 = vmatprep.subr.mxu0 0.0
      %838 = vmatpush1.msra.mxu0 0.0
      %839 = vmatprep.subr.mxu0 0.0
      %840 = vmatpush1.msra.mxu0 0.0
      %841 = vmatprep.subr.mxu0 0.0
      %842 = vmatpush1.msra.mxu0 0.0
      %843 = vmatprep.subr.mxu0 0.0
      %844 = vmatpush1.msra.mxu0 0.0
      %845 = vmatprep.subr.mxu0 0.0
      %846 = vmatpush1.msra.mxu0 0.0
      %847 = vmatprep.subr.mxu0 0.0
      %848 = vmatpush1.msra.mxu0 0.0
      %849 = vmatprep.subr.mxu0 0.0
      %850 = vmatpush1.msra.mxu0 0.0
      %851 = vmatprep.subr.mxu0 0.0
      %852 = vmatpush1.msra.mxu0 0.0
      %853 = vmatprep.subr.mxu0 0.0
      %854 = vmatpush1.msra.mxu0 0.0
      %855 = vmatprep.subr.mxu0 0.0
      %856 = vmatpush1.msra.mxu0 0.0
      %857 = vmatprep.subr.mxu0 0.0
      %858 = vmatpush1.msra.mxu0 0.0
      %859 = vmatprep.subr.mxu0 0.0
      %860 = vmatpush1.msra.mxu0 0.0
      %861 = vmatprep.subr.mxu0 0.0
      %862 = vmatpush1.msra.mxu0 0.0
      %863 = vmatprep.subr.mxu0 0.0
      %864 = vmatpush1.msra.mxu0 0.0
      %865 = vmatprep.subr.mxu0 0.0
      %866 = vmatpush1.msra.mxu0 0.0
      %867 = vmatprep.subr.mxu0 0.0
      %868 = vmatpush1.msra.mxu0 0.0
      %869 = vmatprep.subr.mxu0 0.0
      %870 = vmatpush1.msra.mxu0 0.0
      %871 = vmatprep.subr.mxu0 0.0
      %872 = vmatpush1.msra.mxu0 0.0
      %873 = vmatprep.subr.mxu0 0.0
      %874 = vmatpush1.msra.mxu0 0.0
      %875 = vmatprep.subr.mxu0 0.0
      %876 = vmatpush1.msra.mxu0 0.0
      %877 = vmatprep.subr.mxu0 0.0
      %878 = vmatpush1.msra.mxu0 0.0
      %879 = vmatprep.subr.mxu0 0.0
      %880 = vmatpush1.msra.mxu0 0.0
      %881 = vmatprep.subr.mxu0 0.0
      %882 = vmatpush1.msra.mxu0 0.0
      %883 = vmatprep.subr.mxu0 0.0
      %884 = vmatpush1.msra.mxu0 0.0
      %885 = vmatprep.mubr.f32.mxu0 0.0
      %886 = vmatmul.mubr.f32.gmra.mrb[0].mxu0 %v725
      %v887 = vpop.f32.mrb[0].mxu0
      %v888 = vadd.f32 0.0, %v887
      %v889 = vpop.f32.mrb[0].mxu0
      %890 = vdwg.mxu0
      %891 = vset.pattern.permute.xlu0 2
      %892 = vperm.xlu0 %891, %v692
      %v893 = vpop.permute.xlu0 %892
      %895 = vset.pattern.permute.xlu0 2
      %896 = vperm.xlu0 %895, %v693
      %v897 = vpop.permute.xlu0 %896
      %899 = vset.pattern.permute.xlu0 2
      %900 = vperm.xlu0 %899, %v694
      %v901 = vpop.permute.xlu0 %900
      %903 = vset.pattern.permute.xlu0 2
      %904 = vperm.xlu0 %903, %v695
      %v905 = vpop.permute.xlu0 %904
      %v907 = vadd.f32 %v893, %v671
      %v908 = vadd.f32 %v897, %v676
      %v909 = vadd.f32 %v901, %v681
      %v910 = vadd.f32 %v905, %v686
      %v911 = vtanh.pop %v907
      %v912 = vtanh.pop %v908
      %v913 = vtanh.pop %v909
      %v914 = vtanh.pop %v910
      %915 = vmatprep.subr.mxu0 0.0
      %916 = vmatpush1.msra.mxu0 %v911
      %917 = vmatprep.subr.mxu0 0.0
      %918 = vmatpush1.msra.mxu0 %v912
      %919 = vmatprep.subr.mxu0 0.0
      %920 = vmatpush1.msra.mxu0 %v913
      %921 = vmatprep.subr.mxu0 0.0
      %922 = vmatpush1.msra.mxu0 %v914
      %923 = vmatprep.subr.mxu0 0.0
      %924 = vmatpush1.msra.mxu0 0.0
      %925 = vmatprep.subr.mxu0 0.0
      %926 = vmatpush1.msra.mxu0 0.0
      %927 = vmatprep.subr.mxu0 0.0
      %928 = vmatpush1.msra.mxu0 0.0
      %929 = vmatprep.subr.mxu0 0.0
      %930 = vmatpush1.msra.mxu0 0.0
      %931 = vmatprep.subr.mxu0 0.0
      %932 = vmatpush1.msra.mxu0 0.0
      %933 = vmatprep.subr.mxu0 0.0
      %934 = vmatpush1.msra.mxu0 0.0
      %935 = vmatprep.subr.mxu0 0.0
      %936 = vmatpush1.msra.mxu0 0.0
      %937 = vmatprep.subr.mxu0 0.0
      %938 = vmatpush1.msra.mxu0 0.0
      %939 = vmatprep.subr.mxu0 0.0
      %940 = vmatpush1.msra.mxu0 0.0
      %941 = vmatprep.subr.mxu0 0.0
      %942 = vmatpush1.msra.mxu0 0.0
      %943 = vmatprep.subr.mxu0 0.0
      %944 = vmatpush1.msra.mxu0 0.0
      %945 = vmatprep.subr.mxu0 0.0
      %946 = vmatpush1.msra.mxu0 0.0
      %947 = vmatprep.subr.mxu0 0.0
      %948 = vmatpush1.msra.mxu0 0.0
      %949 = vmatprep.subr.mxu0 0.0
      %950 = vmatpush1.msra.mxu0 0.0
      %951 = vmatprep.subr.mxu0 0.0
      %952 = vmatpush1.msra.mxu0 0.0
      %953 = vmatprep.subr.mxu0 0.0
      %954 = vmatpush1.msra.mxu0 0.0
      %955 = vmatprep.subr.mxu0 0.0
      %956 = vmatpush1.msra.mxu0 0.0
      %957 = vmatprep.subr.mxu0 0.0
      %958 = vmatpush1.msra.mxu0 0.0
      %959 = vmatprep.subr.mxu0 0.0
      %960 = vmatpush1.msra.mxu0 0.0
      %961 = vmatprep.subr.mxu0 0.0
      %962 = vmatpush1.msra.mxu0 0.0
      %963 = vmatprep.subr.mxu0 0.0
      %964 = vmatpush1.msra.mxu0 0.0
      %965 = vmatprep.subr.mxu0 0.0
      %966 = vmatpush1.msra.mxu0 0.0
      %967 = vmatprep.subr.mxu0 0.0
      %968 = vmatpush1.msra.mxu0 0.0
      %969 = vmatprep.subr.mxu0 0.0
      %970 = vmatpush1.msra.mxu0 0.0
      %971 = vmatprep.subr.mxu0 0.0
      %972 = vmatpush1.msra.mxu0 0.0
      %973 = vmatprep.subr.mxu0 0.0
      %974 = vmatpush1.msra.mxu0 0.0
      %975 = vmatprep.subr.mxu0 0.0
      %976 = vmatpush1.msra.mxu0 0.0
      %977 = vmatprep.subr.mxu0 0.0
      %978 = vmatpush1.msra.mxu0 0.0
      %979 = vmatprep.mubr.f32.mxu0 0.0
      %980 = vmatmul.mubr.f32.gmra.mrb[0].mxu0 %v725
      %v981 = vpop.f32.mrb[0].mxu0
      %v982 = vadd.f32 0.0, %v981
      %v983 = vpop.f32.mrb[0].mxu0
      %984 = vdwg.mxu0
      %985 = vset.pattern.permute.xlu0 3
      %986 = vperm.xlu0 %985, %v692
      %v987 = vpop.permute.xlu0 %986
      %989 = vset.pattern.permute.xlu0 3
      %990 = vperm.xlu0 %989, %v693
      %v991 = vpop.permute.xlu0 %990
      %993 = vset.pattern.permute.xlu0 3
      %994 = vperm.xlu0 %993, %v694
      %v995 = vpop.permute.xlu0 %994
      %997 = vset.pattern.permute.xlu0 3
      %998 = vperm.xlu0 %997, %v695
      %v999 = vpop.permute.xlu0 %998
      %v1001 = vadd.f32 %v987, %v671
      %v1002 = vadd.f32 %v991, %v676
      %v1003 = vadd.f32 %v995, %v681
      %v1004 = vadd.f32 %v999, %v686
      %v1005 = vtanh.pop %v1001
      %v1006 = vtanh.pop %v1002
      %v1007 = vtanh.pop %v1003
      %v1008 = vtanh.pop %v1004
      %1009 = vmatprep.subr.mxu0 0.0
      %1010 = vmatpush1.msra.mxu0 %v1005
      %1011 = vmatprep.subr.mxu0 0.0
      %1012 = vmatpush1.msra.mxu0 %v1006
      %1013 = vmatprep.subr.mxu0 0.0
      %1014 = vmatpush1.msra.mxu0 %v1007
      %1015 = vmatprep.subr.mxu0 0.0
      %1016 = vmatpush1.msra.mxu0 %v1008
      %1017 = vmatprep.subr.mxu0 0.0
      %1018 = vmatpush1.msra.mxu0 0.0
      %1019 = vmatprep.subr.mxu0 0.0
      %1020 = vmatpush1.msra.mxu0 0.0
      %1021 = vmatprep.subr.mxu0 0.0
      %1022 = vmatpush1.msra.mxu0 0.0
      %1023 = vmatprep.subr.mxu0 0.0
      %1024 = vmatpush1.msra.mxu0 0.0
      %1025 = vmatprep.subr.mxu0 0.0
      %1026 = vmatpush1.msra.mxu0 0.0
      %1027 = vmatprep.subr.mxu0 0.0
      %1028 = vmatpush1.msra.mxu0 0.0
      %1029 = vmatprep.subr.mxu0 0.0
      %1030 = vmatpush1.msra.mxu0 0.0
      %1031 = vmatprep.subr.mxu0 0.0
      %1032 = vmatpush1.msra.mxu0 0.0
      %1033 = vmatprep.subr.mxu0 0.0
      %1034 = vmatpush1.msra.mxu0 0.0
      %1035 = vmatprep.subr.mxu0 0.0
      %1036 = vmatpush1.msra.mxu0 0.0
      %1037 = vmatprep.subr.mxu0 0.0
      %1038 = vmatpush1.msra.mxu0 0.0
      %1039 = vmatprep.subr.mxu0 0.0
      %1040 = vmatpush1.msra.mxu0 0.0
      %1041 = vmatprep.subr.mxu0 0.0
      %1042 = vmatpush1.msra.mxu0 0.0
      %1043 = vmatprep.subr.mxu0 0.0
      %1044 = vmatpush1.msra.mxu0 0.0
      %1045 = vmatprep.subr.mxu0 0.0
      %1046 = vmatpush1.msra.mxu0 0.0
      %1047 = vmatprep.subr.mxu0 0.0
      %1048 = vmatpush1.msra.mxu0 0.0
      %1049 = vmatprep.subr.mxu0 0.0
      %1050 = vmatpush1.msra.mxu0 0.0
      %1051 = vmatprep.subr.mxu0 0.0
      %1052 = vmatpush1.msra.mxu0 0.0
      %1053 = vmatprep.subr.mxu0 0.0
      %1054 = vmatpush1.msra.mxu0 0.0
      %1055 = vmatprep.subr.mxu0 0.0
      %1056 = vmatpush1.msra.mxu0 0.0
      %1057 = vmatprep.subr.mxu0 0.0
      %1058 = vmatpush1.msra.mxu0 0.0
      %1059 = vmatprep.subr.mxu0 0.0
      %1060 = vmatpush1.msra.mxu0 0.0
      %1061 = vmatprep.subr.mxu0 0.0
      %1062 = vmatpush1.msra.mxu0 0.0
      %1063 = vmatprep.subr.mxu0 0.0
      %1064 = vmatpush1.msra.mxu0 0.0
      %1065 = vmatprep.subr.mxu0 0.0
      %1066 = vmatpush1.msra.mxu0 0.0
      %1067 = vmatprep.subr.mxu0 0.0
      %1068 = vmatpush1.msra.mxu0 0.0
      %1069 = vmatprep.subr.mxu0 0.0
      %1070 = vmatpush1.msra.mxu0 0.0
      %1071 = vmatprep.subr.mxu0 0.0
      %1072 = vmatpush1.msra.mxu0 0.0
      %1073 = vmatprep.mubr.f32.mxu0 0.0
      %1074 = vmatmul.mubr.f32.gmra.mrb[0].mxu0 %v725
      %v1075 = vpop.f32.mrb[0].mxu0
      %v1076 = vadd.f32 0.0, %v1075
      %v1077 = vpop.f32.mrb[0].mxu0
      %1078 = vdwg.mxu0
      %1079 = vset.pattern.permute.xlu0 4
      %1080 = vperm.xlu0 %1079, %v692
      %v1081 = vpop.permute.xlu0 %1080
      %1083 = vset.pattern.permute.xlu0 4
      %1084 = vperm.xlu0 %1083, %v693
      %v1085 = vpop.permute.xlu0 %1084
      %1087 = vset.pattern.permute.xlu0 4
      %1088 = vperm.xlu0 %1087, %v694
      %v1089 = vpop.permute.xlu0 %1088
      %1091 = vset.pattern.permute.xlu0 4
      %1092 = vperm.xlu0 %1091, %v695
      %v1093 = vpop.permute.xlu0 %1092
      %v1095 = vadd.f32 %v1081, %v671
      %v1096 = vadd.f32 %v1085, %v676
      %v1097 = vadd.f32 %v1089, %v681
      %v1098 = vadd.f32 %v1093, %v686
      %v1099 = vtanh.pop %v1095
      %v1100 = vtanh.pop %v1096
      %v1101 = vtanh.pop %v1097
      %v1102 = vtanh.pop %v1098
      %1103 = vmatprep.subr.mxu0 0.0
      %1104 = vmatpush1.msra.mxu0 %v1099
      %1105 = vmatprep.subr.mxu0 0.0
      %1106 = vmatpush1.msra.mxu0 %v1100
      %1107 = vmatprep.subr.mxu0 0.0
      %1108 = vmatpush1.msra.mxu0 %v1101
      %1109 = vmatprep.subr.mxu0 0.0
      %1110 = vmatpush1.msra.mxu0 %v1102
      %1111 = vmatprep.subr.mxu0 0.0
      %1112 = vmatpush1.msra.mxu0 0.0
      %1113 = vmatprep.subr.mxu0 0.0
      %1114 = vmatpush1.msra.mxu0 0.0
      %1115 = vmatprep.subr.mxu0 0.0
      %1116 = vmatpush1.msra.mxu0 0.0
      %1117 = vmatprep.subr.mxu0 0.0
      %1118 = vmatpush1.msra.mxu0 0.0
      %1119 = vmatprep.subr.mxu0 0.0
      %1120 = vmatpush1.msra.mxu0 0.0
      %1121 = vmatprep.subr.mxu0 0.0
      %1122 = vmatpush1.msra.mxu0 0.0
      %1123 = vmatprep.subr.mxu0 0.0
      %1124 = vmatpush1.msra.mxu0 0.0
      %1125 = vmatprep.subr.mxu0 0.0
      %1126 = vmatpush1.msra.mxu0 0.0
      %1127 = vmatprep.subr.mxu0 0.0
      %1128 = vmatpush1.msra.mxu0 0.0
      %1129 = vmatprep.subr.mxu0 0.0
      %1130 = vmatpush1.msra.mxu0 0.0
      %1131 = vmatprep.subr.mxu0 0.0
      %1132 = vmatpush1.msra.mxu0 0.0
      %1133 = vmatprep.subr.mxu0 0.0
      %1134 = vmatpush1.msra.mxu0 0.0
      %1135 = vmatprep.subr.mxu0 0.0
      %1136 = vmatpush1.msra.mxu0 0.0
      %1137 = vmatprep.subr.mxu0 0.0
      %1138 = vmatpush1.msra.mxu0 0.0
      %1139 = vmatprep.subr.mxu0 0.0
      %1140 = vmatpush1.msra.mxu0 0.0
      %1141 = vmatprep.subr.mxu0 0.0
      %1142 = vmatpush1.msra.mxu0 0.0
      %1143 = vmatprep.subr.mxu0 0.0
      %1144 = vmatpush1.msra.mxu0 0.0
      %1145 = vmatprep.subr.mxu0 0.0
      %1146 = vmatpush1.msra.mxu0 0.0
      %1147 = vmatprep.subr.mxu0 0.0
      %1148 = vmatpush1.msra.mxu0 0.0
      %1149 = vmatprep.subr.mxu0 0.0
      %1150 = vmatpush1.msra.mxu0 0.0
      %1151 = vmatprep.subr.mxu0 0.0
      %1152 = vmatpush1.msra.mxu0 0.0
      %1153 = vmatprep.subr.mxu0 0.0
      %1154 = vmatpush1.msra.mxu0 0.0
      %1155 = vmatprep.subr.mxu0 0.0
      %1156 = vmatpush1.msra.mxu0 0.0
      %1157 = vmatprep.subr.mxu0 0.0
      %1158 = vmatpush1.msra.mxu0 0.0
      %1159 = vmatprep.subr.mxu0 0.0
      %1160 = vmatpush1.msra.mxu0 0.0
      %1161 = vmatprep.subr.mxu0 0.0
      %1162 = vmatpush1.msra.mxu0 0.0
      %1163 = vmatprep.subr.mxu0 0.0
      %1164 = vmatpush1.msra.mxu0 0.0
      %1165 = vmatprep.subr.mxu0 0.0
      %1166 = vmatpush1.msra.mxu0 0.0
      %1167 = vmatprep.mubr.f32.mxu0 0.0
      %1168 = vmatmul.mubr.f32.gmra.mrb[0].mxu0 %v725
      %v1169 = vpop.f32.mrb[0].mxu0
      %v1170 = vadd.f32 0.0, %v1169
      %v1171 = vpop.f32.mrb[0].mxu0
      %1172 = vdwg.mxu0
      %1173 = vset.pattern.permute.xlu0 5
      %1174 = vperm.xlu0 %1173, %v692
      %v1175 = vpop.permute.xlu0 %1174
      %1177 = vset.pattern.permute.xlu0 5
      %1178 = vperm.xlu0 %1177, %v693
      %v1179 = vpop.permute.xlu0 %1178
      %1181 = vset.pattern.permute.xlu0 5
      %1182 = vperm.xlu0 %1181, %v694
      %v1183 = vpop.permute.xlu0 %1182
      %1185 = vset.pattern.permute.xlu0 5
      %1186 = vperm.xlu0 %1185, %v695
      %v1187 = vpop.permute.xlu0 %1186
      %v1189 = vadd.f32 %v1175, %v671
      %v1190 = vadd.f32 %v1179, %v676
      %v1191 = vadd.f32 %v1183, %v681
      %v1192 = vadd.f32 %v1187, %v686
      %v1193 = vtanh.pop %v1189
      %v1194 = vtanh.pop %v1190
      %v1195 = vtanh.pop %v1191
      %v1196 = vtanh.pop %v1192
      %1197 = vmatprep.subr.mxu0 0.0
      %1198 = vmatpush1.msra.mxu0 %v1193
      %1199 = vmatprep.subr.mxu0 0.0
      %1200 = vmatpush1.msra.mxu0 %v1194
      %1201 = vmatprep.subr.mxu0 0.0
      %1202 = vmatpush1.msra.mxu0 %v1195
      %1203 = vmatprep.subr.mxu0 0.0
      %1204 = vmatpush1.msra.mxu0 %v1196
      %1205 = vmatprep.subr.mxu0 0.0
      %1206 = vmatpush1.msra.mxu0 0.0
      %1207 = vmatprep.subr.mxu0 0.0
      %1208 = vmatpush1.msra.mxu0 0.0
      %1209 = vmatprep.subr.mxu0 0.0
      %1210 = vmatpush1.msra.mxu0 0.0
      %1211 = vmatprep.subr.mxu0 0.0
      %1212 = vmatpush1.msra.mxu0 0.0
      %1213 = vmatprep.subr.mxu0 0.0
      %1214 = vmatpush1.msra.mxu0 0.0
      %1215 = vmatprep.subr.mxu0 0.0
      %1216 = vmatpush1.msra.mxu0 0.0
      %1217 = vmatprep.subr.mxu0 0.0
      %1218 = vmatpush1.msra.mxu0 0.0
      %1219 = vmatprep.subr.mxu0 0.0
      %1220 = vmatpush1.msra.mxu0 0.0
      %1221 = vmatprep.subr.mxu0 0.0
      %1222 = vmatpush1.msra.mxu0 0.0
      %1223 = vmatprep.subr.mxu0 0.0
      %1224 = vmatpush1.msra.mxu0 0.0
      %1225 = vmatprep.subr.mxu0 0.0
      %1226 = vmatpush1.msra.mxu0 0.0
      %1227 = vmatprep.subr.mxu0 0.0
      %1228 = vmatpush1.msra.mxu0 0.0
      %1229 = vmatprep.subr.mxu0 0.0
      %1230 = vmatpush1.msra.mxu0 0.0
      %1231 = vmatprep.subr.mxu0 0.0
      %1232 = vmatpush1.msra.mxu0 0.0
      %1233 = vmatprep.subr.mxu0 0.0
      %1234 = vmatpush1.msra.mxu0 0.0
      %1235 = vmatprep.subr.mxu0 0.0
      %1236 = vmatpush1.msra.mxu0 0.0
      %1237 = vmatprep.subr.mxu0 0.0
      %1238 = vmatpush1.msra.mxu0 0.0
      %1239 = vmatprep.subr.mxu0 0.0
      %1240 = vmatpush1.msra.mxu0 0.0
      %1241 = vmatprep.subr.mxu0 0.0
      %1242 = vmatpush1.msra.mxu0 0.0
      %1243 = vmatprep.subr.mxu0 0.0
      %1244 = vmatpush1.msra.mxu0 0.0
      %1245 = vmatprep.subr.mxu0 0.0
      %1246 = vmatpush1.msra.mxu0 0.0
      %1247 = vmatprep.subr.mxu0 0.0
      %1248 = vmatpush1.msra.mxu0 0.0
      %1249 = vmatprep.subr.mxu0 0.0
      %1250 = vmatpush1.msra.mxu0 0.0
      %1251 = vmatprep.subr.mxu0 0.0
      %1252 = vmatpush1.msra.mxu0 0.0
      %1253 = vmatprep.subr.mxu0 0.0
      %1254 = vmatpush1.msra.mxu0 0.0
      %1255 = vmatprep.subr.mxu0 0.0
      %1256 = vmatpush1.msra.mxu0 0.0
      %1257 = vmatprep.subr.mxu0 0.0
      %1258 = vmatpush1.msra.mxu0 0.0
      %1259 = vmatprep.subr.mxu0 0.0
      %1260 = vmatpush1.msra.mxu0 0.0
      %1261 = vmatprep.mubr.f32.mxu0 0.0
      %1262 = vmatmul.mubr.f32.gmra.mrb[0].mxu0 %v725
      %v1263 = vpop.f32.mrb[0].mxu0
      %v1264 = vadd.f32 0.0, %v1263
      %v1265 = vpop.f32.mrb[0].mxu0
      %1266 = vdwg.mxu0
      %1267 = vset.pattern.permute.xlu0 6
      %1268 = vperm.xlu0 %1267, %v692
      %v1269 = vpop.permute.xlu0 %1268
      %1271 = vset.pattern.permute.xlu0 6
      %1272 = vperm.xlu0 %1271, %v693
      %v1273 = vpop.permute.xlu0 %1272
      %1275 = vset.pattern.permute.xlu0 6
      %1276 = vperm.xlu0 %1275, %v694
      %v1277 = vpop.permute.xlu0 %1276
      %1279 = vset.pattern.permute.xlu0 6
      %1280 = vperm.xlu0 %1279, %v695
      %v1281 = vpop.permute.xlu0 %1280
      %v1283 = vadd.f32 %v1269, %v671
      %v1284 = vadd.f32 %v1273, %v676
      %v1285 = vadd.f32 %v1277, %v681
      %v1286 = vadd.f32 %v1281, %v686
      %v1287 = vtanh.pop %v1283
      %v1288 = vtanh.pop %v1284
      %v1289 = vtanh.pop %v1285
      %v1290 = vtanh.pop %v1286
      %1291 = vmatprep.subr.mxu0 0.0
      %1292 = vmatpush1.msra.mxu0 %v1287
      %1293 = vmatprep.subr.mxu0 0.0
      %1294 = vmatpush1.msra.mxu0 %v1288
      %1295 = vmatprep.subr.mxu0 0.0
      %1296 = vmatpush1.msra.mxu0 %v1289
      %1297 = vmatprep.subr.mxu0 0.0
      %1298 = vmatpush1.msra.mxu0 %v1290
      %1299 = vmatprep.subr.mxu0 0.0
      %1300 = vmatpush1.msra.mxu0 0.0
      %1301 = vmatprep.subr.mxu0 0.0
      %1302 = vmatpush1.msra.mxu0 0.0
      %1303 = vmatprep.subr.mxu0 0.0
      %1304 = vmatpush1.msra.mxu0 0.0
      %1305 = vmatprep.subr.mxu0 0.0
      %1306 = vmatpush1.msra.mxu0 0.0
      %1307 = vmatprep.subr.mxu0 0.0
      %1308 = vmatpush1.msra.mxu0 0.0
      %1309 = vmatprep.subr.mxu0 0.0
      %1310 = vmatpush1.msra.mxu0 0.0
      %1311 = vmatprep.subr.mxu0 0.0
      %1312 = vmatpush1.msra.mxu0 0.0
      %1313 = vmatprep.subr.mxu0 0.0
      %1314 = vmatpush1.msra.mxu0 0.0
      %1315 = vmatprep.subr.mxu0 0.0
      %1316 = vmatpush1.msra.mxu0 0.0
      %1317 = vmatprep.subr.mxu0 0.0
      %1318 = vmatpush1.msra.mxu0 0.0
      %1319 = vmatprep.subr.mxu0 0.0
      %1320 = vmatpush1.msra.mxu0 0.0
      %1321 = vmatprep.subr.mxu0 0.0
      %1322 = vmatpush1.msra.mxu0 0.0
      %1323 = vmatprep.subr.mxu0 0.0
      %1324 = vmatpush1.msra.mxu0 0.0
      %1325 = vmatprep.subr.mxu0 0.0
      %1326 = vmatpush1.msra.mxu0 0.0
      %1327 = vmatprep.subr.mxu0 0.0
      %1328 = vmatpush1.msra.mxu0 0.0
      %1329 = vmatprep.subr.mxu0 0.0
      %1330 = vmatpush1.msra.mxu0 0.0
      %1331 = vmatprep.subr.mxu0 0.0
      %1332 = vmatpush1.msra.mxu0 0.0
      %1333 = vmatprep.subr.mxu0 0.0
      %1334 = vmatpush1.msra.mxu0 0.0
      %1335 = vmatprep.subr.mxu0 0.0
      %1336 = vmatpush1.msra.mxu0 0.0
      %1337 = vmatprep.subr.mxu0 0.0
      %1338 = vmatpush1.msra.mxu0 0.0
      %1339 = vmatprep.subr.mxu0 0.0
      %1340 = vmatpush1.msra.mxu0 0.0
      %1341 = vmatprep.subr.mxu0 0.0
      %1342 = vmatpush1.msra.mxu0 0.0
      %1343 = vmatprep.subr.mxu0 0.0
      %1344 = vmatpush1.msra.mxu0 0.0
      %1345 = vmatprep.subr.mxu0 0.0
      %1346 = vmatpush1.msra.mxu0 0.0
      %1347 = vmatprep.subr.mxu0 0.0
      %1348 = vmatpush1.msra.mxu0 0.0
      %1349 = vmatprep.subr.mxu0 0.0
      %1350 = vmatpush1.msra.mxu0 0.0
      %1351 = vmatprep.subr.mxu0 0.0
      %1352 = vmatpush1.msra.mxu0 0.0
      %1353 = vmatprep.subr.mxu0 0.0
      %1354 = vmatpush1.msra.mxu0 0.0
      %1355 = vmatprep.mubr.f32.mxu0 0.0
      %1356 = vmatmul.mubr.f32.gmra.mrb[0].mxu0 %v725
      %v1357 = vpop.f32.mrb[0].mxu0
      %v1358 = vadd.f32 0.0, %v1357
      %v1359 = vpop.f32.mrb[0].mxu0
      %1360 = vdwg.mxu0
      %1361 = vset.pattern.permute.xlu0 7
      %1362 = vperm.xlu0 %1361, %v692
      %v1363 = vpop.permute.xlu0 %1362
      %1365 = vset.pattern.permute.xlu0 7
      %1366 = vperm.xlu0 %1365, %v693
      %v1367 = vpop.permute.xlu0 %1366
      %1369 = vset.pattern.permute.xlu0 7
      %1370 = vperm.xlu0 %1369, %v694
      %v1371 = vpop.permute.xlu0 %1370
      %1373 = vset.pattern.permute.xlu0 7
      %1374 = vperm.xlu0 %1373, %v695
      %v1375 = vpop.permute.xlu0 %1374
      %v1377 = vadd.f32 %v1363, %v671
      %v1378 = vadd.f32 %v1367, %v676
      %v1379 = vadd.f32 %v1371, %v681
      %v1380 = vadd.f32 %v1375, %v686
      %v1381 = vtanh.pop %v1377
      %v1382 = vtanh.pop %v1378
      %v1383 = vtanh.pop %v1379
      %v1384 = vtanh.pop %v1380
      %1385 = vmatprep.subr.mxu0 0.0
      %1386 = vmatpush1.msra.mxu0 %v1381
      %1387 = vmatprep.subr.mxu0 0.0
      %1388 = vmatpush1.msra.mxu0 %v1382
      %1389 = vmatprep.subr.mxu0 0.0
      %1390 = vmatpush1.msra.mxu0 %v1383
      %1391 = vmatprep.subr.mxu0 0.0
      %1392 = vmatpush1.msra.mxu0 %v1384
      %1393 = vmatprep.subr.mxu0 0.0
      %1394 = vmatpush1.msra.mxu0 0.0
      %1395 = vmatprep.subr.mxu0 0.0
      %1396 = vmatpush1.msra.mxu0 0.0
      %1397 = vmatprep.subr.mxu0 0.0
      %1398 = vmatpush1.msra.mxu0 0.0
      %1399 = vmatprep.subr.mxu0 0.0
      %1400 = vmatpush1.msra.mxu0 0.0
      %1401 = vmatprep.subr.mxu0 0.0
      %1402 = vmatpush1.msra.mxu0 0.0
      %1403 = vmatprep.subr.mxu0 0.0
      %1404 = vmatpush1.msra.mxu0 0.0
      %1405 = vmatprep.subr.mxu0 0.0
      %1406 = vmatpush1.msra.mxu0 0.0
      %1407 = vmatprep.subr.mxu0 0.0
      %1408 = vmatpush1.msra.mxu0 0.0
      %1409 = vmatprep.subr.mxu0 0.0
      %1410 = vmatpush1.msra.mxu0 0.0
      %1411 = vmatprep.subr.mxu0 0.0
      %1412 = vmatpush1.msra.mxu0 0.0
      %1413 = vmatprep.subr.mxu0 0.0
      %1414 = vmatpush1.msra.mxu0 0.0
      %1415 = vmatprep.subr.mxu0 0.0
      %1416 = vmatpush1.msra.mxu0 0.0
      %1417 = vmatprep.subr.mxu0 0.0
      %1418 = vmatpush1.msra.mxu0 0.0
      %1419 = vmatprep.subr.mxu0 0.0
      %1420 = vmatpush1.msra.mxu0 0.0
      %1421 = vmatprep.subr.mxu0 0.0
      %1422 = vmatpush1.msra.mxu0 0.0
      %1423 = vmatprep.subr.mxu0 0.0
      %1424 = vmatpush1.msra.mxu0 0.0
      %1425 = vmatprep.subr.mxu0 0.0
      %1426 = vmatpush1.msra.mxu0 0.0
      %1427 = vmatprep.subr.mxu0 0.0
      %1428 = vmatpush1.msra.mxu0 0.0
      %1429 = vmatprep.subr.mxu0 0.0
      %1430 = vmatpush1.msra.mxu0 0.0
      %1431 = vmatprep.subr.mxu0 0.0
      %1432 = vmatpush1.msra.mxu0 0.0
      %1433 = vmatprep.subr.mxu0 0.0
      %1434 = vmatpush1.msra.mxu0 0.0
      %1435 = vmatprep.subr.mxu0 0.0
      %1436 = vmatpush1.msra.mxu0 0.0
      %1437 = vmatprep.subr.mxu0 0.0
      %1438 = vmatpush1.msra.mxu0 0.0
      %1439 = vmatprep.subr.mxu0 0.0
      %1440 = vmatpush1.msra.mxu0 0.0
      %1441 = vmatprep.subr.mxu0 0.0
      %1442 = vmatpush1.msra.mxu0 0.0
      %1443 = vmatprep.subr.mxu0 0.0
      %1444 = vmatpush1.msra.mxu0 0.0
      %1445 = vmatprep.subr.mxu0 0.0
      %1446 = vmatpush1.msra.mxu0 0.0
      %1447 = vmatprep.subr.mxu0 0.0
      %1448 = vmatpush1.msra.mxu0 0.0
      %1449 = vmatprep.mubr.f32.mxu0 0.0
      %1450 = vmatmul.mubr.f32.gmra.mrb[0].mxu0 %v725
      %v1451 = vpop.f32.mrb[0].mxu0
      %v1452 = vadd.f32 0.0, %v1451
      %v1453 = vpop.f32.mrb[0].mxu0
      %1454 = vdwg.mxu0
      %v1456 = vrot.slane %v888, 7
      %v1459 = vrot.slane %v982, 6
      %v1462 = vrot.slane %v1076, 5
      %v1465 = vrot.slane %v1170, 4
      %v1468 = vrot.slane %v1264, 3
      %v1471 = vrot.slane %v1358, 2
      %v1474 = vrot.slane %v1452, 1
      %vm1476 = vcmask 1040384
      %v1477 = vsel %vm1476, %v794, %v1456
      %vm1478 = vcmask 1041408
      %v1479 = vsel %vm1478, %v1477, %v1459
      %vm1480 = vcmask 1042432
      %v1481 = vsel %vm1480, %v1479, %v1462
      %vm1482 = vcmask 1043456
      %v1483 = vsel %vm1482, %v1481, %v1465
      %vm1484 = vcmask 1044480
      %v1485 = vsel %vm1484, %v1483, %v1468
      %vm1486 = vcmask 1045504
      %v1487 = vsel %vm1486, %v1485, %v1471
      %vm1488 = vcmask 1046528
      %v1489 = vsel %vm1488, %v1487, %v1474
      %v1490 = vsel %vm691, 1, 0
      %v1491 = vlaneseq
      %v1492 = vshrl.u32 %v1491, 7
      %v1493 = vsub.s32 0, %v1492
      %v1494 = vrot.slane %v1490, %v1493
      %vm1495 = vcmp.eq.s32.totalorder %v1494, 1
      %v1496 = vsel %vm1495, %v1489, -10000.0
      %1497 = vst [vmem:[%s443] sm:$0xff] %v1496
      %p1498 = scmp.lt.s32.totalorder %s23, 7
      %s1499 = scalar_select %p1498, %s23, 7
      %p1500 = scmp.lt.s32.totalorder %s24, 1
      %s1501 = scalar_select %p1500, %s24, 1
      %p1502 = scmp.lt.s32.totalorder %s25, 0
      %s1503 = scalar_select %p1502, %s25, 0
      %s1504 = sadd.s32 %s1503, %s1501
      %s1505 = smul.addr %s1499, 2
      %s1506 = sadd.s32 %s1504, %s1505
      %s1507 = smul.addr %s1506, 8
      %s1508 = scalar_lea.vmem %s7, %s1507
      // Predicated region
      $region53: #{setpred4re_forward.3} parent=47 // pred_check
        %p1509 = pneg %p245
      $region54: #{setpred4re_forward.3} parent=47 // pred_check_branch
        %1511 = sbr.rel (%p1509) target = $region56
      $region55: #{setpred4re_forward.3} parent=47 // pred_region
        _
      $region56: #{setpred4re_forward.3} parent=47 // pred_fallthru
        _
    $region48: #{setpred4re_forward.3} parent=5 // pred_fallthru
      _
    %p1512 = scmp.le.s32.totalorder 2, %s13
    // Predicated region
    $region57: #{setpred4re_forward.3} parent=5 // pred_check
      %p1513 = pneg %p1512
    $region58: #{setpred4re_forward.3} parent=5 // pred_check_branch
      %1515 = sbr.rel (%p1513) target = $region60
    $region59: #{setpred4re_forward.3} parent=5 // pred_region
      %s1516 = ssub.s32 %s13, 2
      // Predicated region
      $region61: #{setpred4re_forward.3} parent=59 // pred_check
        %p1517 = pneg %p251
      $region62: #{setpred4re_forward.3} parent=59 // pred_check_branch
        %1519 = sbr.rel (%p1517) target = $region64
      $region63: #{setpred4re_forward.3} parent=59 // pred_region
        %p1520 = scmp.lt.s32.totalorder %s26, 7
        %s1521 = scalar_select %p1520, %s26, 7
        %p1522 = scmp.lt.s32.totalorder %s27, 1
        %s1523 = scalar_select %p1522, %s27, 1
        %p1524 = scmp.lt.s32.totalorder %s28, 0
        %s1525 = scalar_select %p1524, %s28, 0
        %s1526 = sadd.s32 %s1525, %s1523
        %s1527 = smul.addr %s1521, 2
        %s1528 = sadd.s32 %s1526, %s1527
        %s1529 = smul.addr %s1528, 8
        %s1530 = scalar_lea.vmem %s7, %s1529
      $region64: #{setpred4re_forward.3} parent=59 // pred_fallthru
        _
    $region60: #{setpred4re_forward.3} parent=5 // pred_fallthru
      _
  $region6: #{setpred4re_forward.3} parent=0 // loop_footer
    %s17 = sadd.s32 1, %s13
  $region7: #{setpred4re_forward.3} parent=0 // loop_footer_branch
    %12 = sbr.rel target = $region3
  $region8: #{setpred4re_forward.3} parent=0 // loop_exit
    _

</llo_original>
